<compile_context>
chip_gen: v7x
topology: tpu7x:2x2x1
jax: 0.10.0
libtpu: 0.0.40
codegen_flags: <defaults>
</compile_context>

<pallas_src>
import jax
import jax.numpy as jnp
from jax.experimental import pallas as pl
from jax.experimental.pallas import tpu as pltpu


# --------------------------------------------------------------------------- #
# Kernel
# --------------------------------------------------------------------------- #
def lca_kernel(x_ref, dwm_ref, db_ref, pw_ref, pb_ref,
               w1_ref, b1_ref, w2t_ref, b2_ref, swm_ref, sb_ref, o_ref):
    x = x_ref[...].astype(jnp.float32)                  # (Bt, Cin, L)
    Bt, Cin, L = x.shape
    K = dwm_ref.shape[0]
    pad_d = K // 2

    # ---- depthwise conv (groups=Cin, zero padding) --------------------------
    # One pltpu.roll (XLU) + FMA per tap; edge zero-padding is already folded
    # into the pre-masked tap weights dwm_ref[k] (Cin, L).
    dconv = jnp.zeros((Bt, Cin, L), jnp.float32)
    for k in range(K):
        s = pad_d - k
        r = x if s == 0 else pltpu.roll(x, s % L, 2)
        dconv = dconv + dwm_ref[k][None, :, :] * r
    dconv = dconv + db_ref[...][None, :, :]             # + (Cin,1) bias

    # ---- pointwise 1x1 conv: per-batch 2-D MXU matmuls ----------------------
    # (Cout,Cin) x (Cin,L) per batch -- weights are NOT replicated per batch.
    pw = pw_ref[...]                                    # (Cout, Cin)
    Cout = pw.shape[0]
    outs = [jnp.dot(pw, dconv[b], preferred_element_type=jnp.float32)
            for b in range(Bt)]
    out = jnp.stack(outs, axis=0) + pb_ref[...][None, :, :]   # (Bt, Cout, L)

    # ---- channel attention: global avg pool + tiny MLP (VPU) + sigmoid ------
    # H = Cout // 16 is tiny; do the two "dots" as H broadcast-FMA + lane
    # reduces on the VPU/XLU instead of nearly-empty MXU passes.  All f32.
    avg = jnp.sum(out, axis=-1) * jnp.float32(1.0 / L)  # (Bt, Cout)
    H = w1_ref.shape[0]
    ca_pre = jnp.zeros((Bt, Cout), jnp.float32) + b2_ref[...]
    for j in range(H):
        w1j = w1_ref[j:j + 1, :]                        # (1, Cout)
        w2j = w2t_ref[j:j + 1, :]                       # (1, Cout)
        hj = jnp.sum(avg * w1j, axis=-1, keepdims=True) + b1_ref[j]   # (Bt,1)
        hj = jnp.maximum(hj, 0.0)
        ca_pre = ca_pre + hj * w2j
    ca = jax.nn.sigmoid(ca_pre)                         # (Bt, Cout)
    out = out * ca[:, :, None]

    # ---- spatial attention: 7-tap conv over [max, mean], one roll per tap ---
    mx = jnp.max(out, axis=1, keepdims=True)            # (Bt, 1, L)
    av = jnp.mean(out, axis=1, keepdims=True)           # (Bt, 1, L)
    cat = jnp.concatenate([mx, av], axis=1)             # (Bt, 2, L)
    acc = jnp.zeros((Bt, 2, L), jnp.float32)
    for k in range(7):
        s = 3 - k
        r = cat if s == 0 else pltpu.roll(cat, s % L, 2)
        acc = acc + swm_ref[k][None, :, :] * r          # pre-masked (2, L) taps
    sconv = jnp.sum(acc, axis=1, keepdims=True) + sb_ref[0]
    sa = jax.nn.sigmoid(sconv)                          # (Bt, 1, L)

    o_ref[...] = (out * sa).astype(o_ref.dtype)


# --------------------------------------------------------------------------- #
# Wrapper helpers
# --------------------------------------------------------------------------- #
def _edge_masks(K, L):
    """(K, L) f32 masks that zero out wrapped lanes of a roll-by-(pad-k)."""
    pad = K // 2
    lane = jnp.arange(L)
    rows = []
    for k in range(K):
        s = pad - k
        if s > 0:
            m = lane >= s
        elif s < 0:
            m = lane < L + s
        else:
            m = jnp.ones((L,), bool)
        rows.append(m)
    return jnp.stack(rows).astype(jnp.float32)


def _vmem_capacity_bytes():
    try:
        return int(pltpu.get_tpu_info().vmem_capacity_bytes)
    except Exception:
        return 64 << 20          # conservative (v7x-sized) fallback


def _pick_bt(B, Cin, Cout, L, io_itemsize, budget, cap=128):
    """Largest batch tile that fits the generation-aware VMEM budget, capped
    (the pointwise conv is a statically unrolled per-batch dot), keeping at
    least 2 grid steps and preferring an even step count (v7x has 2 TCs)."""
    per_io = (Cin + Cout) * L * io_itemsize             # in+out block / batch
    per_live = (2 * Cin + 5 * Cout) * L * 4              # f32 intermediates
    per_batch = 2 * per_io + per_live                    # ~double-buffered io
    bt = int(max(1, min(cap, budget // per_batch, B)))
    if B > 1 and bt >= B:
        bt = pl.cdiv(B, 2)                               # >= 2 grid steps
    steps = pl.cdiv(B, bt)
    if steps > 1 and steps % 2 == 1:
        bt = max(1, pl.cdiv(B, steps + 1))               # even step count
    return bt


# --------------------------------------------------------------------------- #
# Public wrapper
# --------------------------------------------------------------------------- #
def lightweight_conv_attention(x, dw, db, pw, pb, w1, b1, w2, b2, sw, sb, *,
                               bt=None, io_dtype=jnp.float32):
    """x: (B, Cin, L).
    dw: (Cin, K) depthwise weight, db: (Cin,) bias.
    pw: (Cout, Cin) pointwise weight, pb: (Cout,) bias.
    w1: (H, Cout), b1: (H,), w2: (Cout, H), b2: (Cout,) channel-attn MLP.
    sw: (2, 7) spatial conv weight, sb: () spatial conv bias.
    io_dtype: dtype at the HBM boundary (f32 or bf16); compute stays f32.
    Returns (B, Cout, L) in io_dtype."""
    B, Cin, L = x.shape
    Cout = pw.shape[0]
    K = dw.shape[-1]
    H = w1.shape[0]
    if L <= max(K // 2, 3):
        raise ValueError("L must exceed the conv half-widths (roll+mask).")
    # TODO(synk): if production L is not a multiple of 128, pad L (and mask the
    # channel-mean / spatial taps) in this wrapper to keep lane-dense stores.

    io_itemsize = jnp.dtype(io_dtype).itemsize
    capacity = _vmem_capacity_bytes()
    budget = (capacity * 3) // 4
    if bt is None:
        bt = _pick_bt(B, Cin, Cout, L, io_itemsize, budget)
    steps = pl.cdiv(B, bt)
    B_pad = steps * bt

    # ---- kernel-friendly weight layouts, computed once outside the kernel ---
    mk = _edge_masks(K, L)                                        # (K, L)
    m7 = _edge_masks(7, L)                                        # (7, L)
    dw_m = (jnp.transpose(dw).astype(jnp.float32)[:, :, None]
            * mk[:, None, :])                                     # (K, Cin, L)
    sw_m = (jnp.transpose(sw).astype(jnp.float32)[:, :, None]
            * m7[:, None, :])                                     # (7, 2, L)
    db_k = db.astype(jnp.float32)[:, None]                        # (Cin, 1)
    pw_k = pw.astype(jnp.float32)                                 # (Cout, Cin)
    pb_k = pb.astype(jnp.float32)[:, None]                        # (Cout, 1)
    w1_k = w1.astype(jnp.float32)                                 # (H, Cout)
    w2t_k = jnp.transpose(w2).astype(jnp.float32)                 # (H, Cout)
    b1_k = b1.astype(jnp.float32)                                 # (H,)  SMEM
    b2_k = b2.astype(jnp.float32)[None, :]                        # (1, Cout)
    sb_k = jnp.reshape(sb, (1,)).astype(jnp.float32)              # (1,)  SMEM

    x_io = x.astype(io_dtype)
    if B_pad != B:
        x_io = jnp.pad(x_io, ((0, B_pad - B), (0, 0), (0, 0)))

    # ---- VMEM limit / cost estimate -----------------------------------------
    in_block = bt * Cin * L * io_itemsize
    out_block = bt * Cout * L * io_itemsize
    live = bt * (2 * Cin + 5 * Cout) * L * 4
    weights_b = 4 * (K * Cin * L + Cin + Cout * Cin + Cout + 2 * H * Cout
                     + Cout + 14 * L) + (1 << 20)
    vmem_limit = int(min(int(capacity * 0.9),
                         max(32 << 20,
                             2 * (in_block + out_block) + live + weights_b
                             + (4 << 20))))

    flops = (2 * B_pad * L * (Cin * K + Cout * Cin)
             + 4 * B_pad * Cout * H
             + 14 * B_pad * (Cin + Cout) * L)
    transcendentals = B_pad * (Cout + L)
    bytes_accessed = io_itemsize * B_pad * L * (Cin + Cout) + weights_b

    # NOTE: pipeline_mode=pl.Buffered(3) on x / out is a possible extra win on
    # v5e/v6e (VMEM headroom); kept at the default double-buffering here.
    out = pl.pallas_call(
        lca_kernel,
        out_shape=jax.ShapeDtypeStruct((B_pad, Cout, L), io_dtype),
        grid_spec=pltpu.PrefetchScalarGridSpec(
            num_scalar_prefetch=0,
            grid=(steps,),
            in_specs=[
                pl.BlockSpec((bt, Cin, L), lambda b: (b, 0, 0)),    # x
                pl.BlockSpec((K, Cin, L), lambda b: (0, 0, 0)),     # masked dw taps
                pl.BlockSpec((Cin, 1), lambda b: (0, 0)),           # dw bias
                pl.BlockSpec((Cout, Cin), lambda b: (0, 0)),        # pw
                pl.BlockSpec((Cout, 1), lambda b: (0, 0)),          # pw bias
                pl.BlockSpec((H, Cout), lambda b: (0, 0)),          # ca w1
                pl.BlockSpec(memory_space=pltpu.MemorySpace.SMEM),  # ca b1 (H,)
                pl.BlockSpec((H, Cout), lambda b: (0, 0)),          # ca w2^T
                pl.BlockSpec((1, Cout), lambda b: (0, 0)),          # ca b2
                pl.BlockSpec((7, 2, L), lambda b: (0, 0, 0)),       # masked sa taps
                pl.BlockSpec(memory_space=pltpu.MemorySpace.SMEM),  # sa bias (1,)
            ],
            out_specs=pl.BlockSpec((bt, Cout, L), lambda b: (b, 0, 0)),
        ),
        compiler_params=pltpu.CompilerParams(
            dimension_semantics=("parallel",),
            vmem_limit_bytes=vmem_limit),
        cost_estimate=pl.CostEstimate(flops=flops,
                                      transcendentals=transcendentals,
                                      bytes_accessed=bytes_accessed),
    )(x_io, dw_m, db_k, pw_k, pb_k, w1_k, b1_k, w2t_k, b2_k, sw_m, sb_k)
    return out[:B]


# --------------------------------------------------------------------------- #
# Pure-JAX reference (mirrors the PyTorch forward) for verification
# --------------------------------------------------------------------------- #
def lca_ref(x, dw, db, pw, pb, w1, b1, w2, b2, sw, sb):
    B, Cin, L = x.shape
    K = dw.shape[-1]
    pad = K // 2
    xp = jnp.pad(x, ((0, 0), (0, 0), (pad, pad)))
    dconv = jnp.zeros((B, Cin, L), jnp.float32)
    for k in range(K):
        dconv = dconv + dw[None, :, k, None] * xp[:, :, k:k + L]
    dconv = dconv + db[None, :, None]
    out = (jnp.einsum('oc,bcl->bol', pw, dconv, precision='highest')
           + pb[None, :, None])
    avg = jnp.mean(out, axis=-1)                                  # (B, Cout)
    h = jnp.maximum(jnp.einsum('bc,hc->bh', avg, w1, precision='highest')
                    + b1, 0.0)
    ca = jax.nn.sigmoid(jnp.einsum('bh,ch->bc', h, w2, precision='highest')
                        + b2)
    out = out * ca[:, :, None]
    mx = jnp.max(out, axis=1, keepdims=True)
    av = jnp.mean(out, axis=1, keepdims=True)
    cat = jnp.concatenate([mx, av], axis=1)                       # (B, 2, L)
    catp = jnp.pad(cat, ((0, 0), (0, 0), (3, 3)))
    sconv = jnp.zeros((B, 1, L), jnp.float32) + sb
    for k in range(7):
        sconv = sconv + jnp.sum(sw[None, :, k, None] * catp[:, :, k:k + L],
                                axis=1, keepdims=True)
    return out * jax.nn.sigmoid(sconv)


# --------------------------------------------------------------------------- #
# Demo
# --------------------------------------------------------------------------- #
if __name__ == "__main__":
    B, Cin, Cout, L, K = 4, 16, 32, 128, 5
    H = Cout // 16   # = 2, as in the PyTorch module (out_channels // 16)

    key = jax.random.PRNGKey(0)
    ks = jax.random.split(key, 11)
    x = jax.random.normal(ks[0], (B, Cin, L), dtype=jnp.float32)
    dw = jax.random.normal(ks[1], (Cin, K), jnp.float32) * (1.0 / jnp.sqrt(K))
    db = jax.random.normal(ks[2], (Cin,), jnp.float32) * 0.1
    pw = jax.random.normal(ks[3], (Cout, Cin), jnp.float32) * (1.0 / jnp.sqrt(Cin))
    pb = jax.random.normal(ks[4], (Cout,), jnp.float32) * 0.1
    w1 = jax.random.normal(ks[5], (H, Cout), jnp.float32) * (1.0 / jnp.sqrt(Cout))
    b1 = jax.random.normal(ks[6], (H,), jnp.float32) * 0.1
    w2 = jax.random.normal(ks[7], (Cout, H), jnp.float32) * (1.0 / jnp.sqrt(H))
    b2 = jax.random.normal(ks[8], (Cout,), jnp.float32) * 0.1
    sw = jax.random.normal(ks[9], (2, 7), jnp.float32) * (1.0 / jnp.sqrt(14.0))
    sb = jax.random.normal(ks[10], (), jnp.float32) * 0.1

    ref = lca_ref(x, dw, db, pw, pb, w1, b1, w2, b2, sw, sb)

    # f32 I/O path (strict check)
    out = lightweight_conv_attention(x, dw, db, pw, pb, w1, b1, w2, b2, sw, sb)
    out = jax.block_until_ready(out)
    assert out.shape == (B, Cout, L)
    assert jnp.allclose(out, ref, atol=1e-3, rtol=1e-3), "f32 mismatch vs reference"

    # bf16 I/O path (HBM-bandwidth saver; compute stays f32) -- loose check
    out_bf = lightweight_conv_attention(x, dw, db, pw, pb, w1, b1, w2, b2, sw, sb,
                                        io_dtype=jnp.bfloat16)
    out_bf = jax.block_until_ready(out_bf)
    assert out_bf.shape == (B, Cout, L)
    assert jnp.allclose(out_bf.astype(jnp.float32), ref, atol=0.1, rtol=0.05), \
        "bf16 mismatch vs reference"

    print("KERNEL_OK")
</pallas_src>

<mosaic_0001>
module attributes {stable_mosaic.version = 11 : i64} {
  func.func @lca_kernel(%arg0: i32, %arg1: memref<2x16x128xf32, #tpu.memory_space<vmem>>, %arg2: memref<5x16x128xf32, #tpu.memory_space<vmem>>, %arg3: memref<16x1xf32, #tpu.memory_space<vmem>>, %arg4: memref<32x16xf32, #tpu.memory_space<vmem>>, %arg5: memref<32x1xf32, #tpu.memory_space<vmem>>, %arg6: memref<2x32xf32, #tpu.memory_space<vmem>>, %arg7: memref<2xf32, #tpu.memory_space<smem>>, %arg8: memref<2x32xf32, #tpu.memory_space<vmem>>, %arg9: memref<1x32xf32, #tpu.memory_space<vmem>>, %arg10: memref<7x2x128xf32, #tpu.memory_space<vmem>>, %arg11: memref<1xf32, #tpu.memory_space<smem>>, %arg12: memref<2x32x128xf32, #tpu.memory_space<vmem>>) attributes {dimension_semantics = [#tpu.dimension_semantics<parallel>], iteration_bounds = array<i64: 2>, scalar_prefetch = 0 : i64, scratch_operands = 0 : i64, tpu.core_type = #tpu.core_type<tc>, window_params = [{transform_indices = @transform_0, window_bounds = array<i64: 2, 16, 128>}, {pipeline_mode = #tpu.pipeline_mode<synchronous>, transform_indices = @transform_1, window_bounds = array<i64: 5, 16, 128>}, {pipeline_mode = #tpu.pipeline_mode<synchronous>, transform_indices = @transform_2, window_bounds = array<i64: 16, 1>}, {pipeline_mode = #tpu.pipeline_mode<synchronous>, transform_indices = @transform_3, window_bounds = array<i64: 32, 16>}, {pipeline_mode = #tpu.pipeline_mode<synchronous>, transform_indices = @transform_4, window_bounds = array<i64: 32, 1>}, {pipeline_mode = #tpu.pipeline_mode<synchronous>, transform_indices = @transform_5, window_bounds = array<i64: 2, 32>}, {transform_indices = @transform_6, window_bounds = array<i64: 2>}, {pipeline_mode = #tpu.pipeline_mode<synchronous>, transform_indices = @transform_7, window_bounds = array<i64: 2, 32>}, {pipeline_mode = #tpu.pipeline_mode<synchronous>, transform_indices = @transform_8, window_bounds = array<i64: 1, 32>}, {pipeline_mode = #tpu.pipeline_mode<synchronous>, transform_indices = @transform_9, window_bounds = array<i64: 7, 2, 128>}, {transform_indices = @transform_10, window_bounds = array<i64: 1>}, {transform_indices = @transform_11, window_bounds = array<i64: 2, 32, 128>}]} {
    %c0 = arith.constant 0 : index
    %c0_0 = arith.constant 0 : index
    %c0_1 = arith.constant 0 : index
    %0 = vector.load %arg1[%c0, %c0_0, %c0_1] : memref<2x16x128xf32, #tpu.memory_space<vmem>>, vector<2x16x128xf32>
    %cst = arith.constant 0.000000e+00 : f32
    %1 = vector.broadcast %cst : f32 to vector<2x16x128xf32>
    %c2_i32 = arith.constant 2 : i32
    %2 = tpu.dynamic_rotate %0 by %c2_i32 dim 2 : vector<2x16x128xf32>, i32 -> vector<2x16x128xf32>
    %c0_2 = arith.constant 0 : index
    %c0_3 = arith.constant 0 : index
    %c0_4 = arith.constant 0 : index
    %3 = vector.load %arg2[%c0_2, %c0_3, %c0_4] : memref<5x16x128xf32, #tpu.memory_space<vmem>>, vector<1x16x128xf32>
    %4 = vector.shape_cast %3 : vector<1x16x128xf32> to vector<16x128xf32>
    %5 = vector.shape_cast %4 : vector<16x128xf32> to vector<1x16x128xf32>
    %6 = vector.broadcast %5 : vector<1x16x128xf32> to vector<2x16x128xf32>
    %7 = arith.mulf %6, %2 : vector<2x16x128xf32>
    %8 = arith.addf %1, %7 : vector<2x16x128xf32>
    %c1_i32 = arith.constant 1 : i32
    %9 = tpu.dynamic_rotate %0 by %c1_i32 dim 2 : vector<2x16x128xf32>, i32 -> vector<2x16x128xf32>
    %c1 = arith.constant 1 : index
    %c0_5 = arith.constant 0 : index
    %c0_6 = arith.constant 0 : index
    %10 = vector.load %arg2[%c1, %c0_5, %c0_6] : memref<5x16x128xf32, #tpu.memory_space<vmem>>, vector<1x16x128xf32>
    %11 = vector.shape_cast %10 : vector<1x16x128xf32> to vector<16x128xf32>
    %12 = vector.shape_cast %11 : vector<16x128xf32> to vector<1x16x128xf32>
    %13 = vector.broadcast %12 : vector<1x16x128xf32> to vector<2x16x128xf32>
    %14 = arith.mulf %13, %9 : vector<2x16x128xf32>
    %15 = arith.addf %8, %14 : vector<2x16x128xf32>
    %c2 = arith.constant 2 : index
    %c0_7 = arith.constant 0 : index
    %c0_8 = arith.constant 0 : index
    %16 = vector.load %arg2[%c2, %c0_7, %c0_8] : memref<5x16x128xf32, #tpu.memory_space<vmem>>, vector<1x16x128xf32>
    %17 = vector.shape_cast %16 : vector<1x16x128xf32> to vector<16x128xf32>
    %18 = vector.shape_cast %17 : vector<16x128xf32> to vector<1x16x128xf32>
    %19 = vector.broadcast %18 : vector<1x16x128xf32> to vector<2x16x128xf32>
    %20 = arith.mulf %19, %0 : vector<2x16x128xf32>
    %21 = arith.addf %15, %20 : vector<2x16x128xf32>
    %c127_i32 = arith.constant 127 : i32
    %22 = tpu.dynamic_rotate %0 by %c127_i32 dim 2 : vector<2x16x128xf32>, i32 -> vector<2x16x128xf32>
    %c3 = arith.constant 3 : index
    %c0_9 = arith.constant 0 : index
    %c0_10 = arith.constant 0 : index
    %23 = vector.load %arg2[%c3, %c0_9, %c0_10] : memref<5x16x128xf32, #tpu.memory_space<vmem>>, vector<1x16x128xf32>
    %24 = vector.shape_cast %23 : vector<1x16x128xf32> to vector<16x128xf32>
    %25 = vector.shape_cast %24 : vector<16x128xf32> to vector<1x16x128xf32>
    %26 = vector.broadcast %25 : vector<1x16x128xf32> to vector<2x16x128xf32>
    %27 = arith.mulf %26, %22 : vector<2x16x128xf32>
    %28 = arith.addf %21, %27 : vector<2x16x128xf32>
    %c126_i32 = arith.constant 126 : i32
    %29 = tpu.dynamic_rotate %0 by %c126_i32 dim 2 : vector<2x16x128xf32>, i32 -> vector<2x16x128xf32>
    %c4 = arith.constant 4 : index
    %c0_11 = arith.constant 0 : index
    %c0_12 = arith.constant 0 : index
    %30 = vector.load %arg2[%c4, %c0_11, %c0_12] : memref<5x16x128xf32, #tpu.memory_space<vmem>>, vector<1x16x128xf32>
    %31 = vector.shape_cast %30 : vector<1x16x128xf32> to vector<16x128xf32>
    %32 = vector.shape_cast %31 : vector<16x128xf32> to vector<1x16x128xf32>
    %33 = vector.broadcast %32 : vector<1x16x128xf32> to vector<2x16x128xf32>
    %34 = arith.mulf %33, %29 : vector<2x16x128xf32>
    %35 = arith.addf %28, %34 : vector<2x16x128xf32>
    %c0_13 = arith.constant 0 : index
    %c0_14 = arith.constant 0 : index
    %36 = vector.load %arg3[%c0_13, %c0_14] : memref<16x1xf32, #tpu.memory_space<vmem>>, vector<16x1xf32>
    %37 = vector.shape_cast %36 : vector<16x1xf32> to vector<1x16x1xf32>
    %38 = vector.broadcast %37 : vector<1x16x1xf32> to vector<2x16x128xf32>
    %39 = arith.addf %35, %38 : vector<2x16x128xf32>
    %c0_15 = arith.constant 0 : index
    %c0_16 = arith.constant 0 : index
    %40 = vector.load %arg4[%c0_15, %c0_16] : memref<32x16xf32, #tpu.memory_space<vmem>>, vector<32x16xf32>
    %41 = vector.extract_strided_slice %39 {offsets = [0, 0, 0], sizes = [1, 16, 128], strides = [1, 1, 1]} : vector<2x16x128xf32> to vector<1x16x128xf32>
    %42 = vector.shape_cast %41 : vector<1x16x128xf32> to vector<16x128xf32>
    %cst_17 = arith.constant dense<0.000000e+00> : vector<32x128xf32>
    %43 = tpu.matmul %40, %42, %cst_17 {dimension_numbers = #tpu.dot_dimension_numbers<[1], [0], [0], [1], [0, 0, 1, 1], [], []>} : vector<32x16xf32>, vector<16x128xf32>, vector<32x128xf32> -> vector<32x128xf32>
    %44 = vector.extract_strided_slice %39 {offsets = [1, 0, 0], sizes = [1, 16, 128], strides = [1, 1, 1]} : vector<2x16x128xf32> to vector<1x16x128xf32>
    %45 = vector.shape_cast %44 : vector<1x16x128xf32> to vector<16x128xf32>
    %cst_18 = arith.constant dense<0.000000e+00> : vector<32x128xf32>
    %46 = tpu.matmul %40, %45, %cst_18 {dimension_numbers = #tpu.dot_dimension_numbers<[1], [0], [0], [1], [0, 0, 1, 1], [], []>} : vector<32x16xf32>, vector<16x128xf32>, vector<32x128xf32> -> vector<32x128xf32>
    %47 = vector.shape_cast %43 : vector<32x128xf32> to vector<1x32x128xf32>
    %48 = vector.shape_cast %46 : vector<32x128xf32> to vector<1x32x128xf32>
    %49 = tpu.concatenate %47, %48 in 0 : vector<1x32x128xf32>, vector<1x32x128xf32> -> vector<2x32x128xf32>
    %c0_19 = arith.constant 0 : index
    %c0_20 = arith.constant 0 : index
    %50 = vector.load %arg5[%c0_19, %c0_20] : memref<32x1xf32, #tpu.memory_space<vmem>>, vector<32x1xf32>
    %51 = vector.shape_cast %50 : vector<32x1xf32> to vector<1x32x1xf32>
    %52 = vector.broadcast %51 : vector<1x32x1xf32> to vector<2x32x128xf32>
    %53 = arith.addf %49, %52 : vector<2x32x128xf32>
    %cst_21 = arith.constant dense<0.000000e+00> : vector<2x32xf32>
    %54 = vector.multi_reduction <add>, %53, %cst_21 [2] : vector<2x32x128xf32> to vector<2x32xf32>
    %cst_22 = arith.constant 7.812500e-03 : f32
    %55 = vector.broadcast %cst_22 : f32 to vector<2x32xf32>
    %56 = arith.mulf %54, %55 : vector<2x32xf32>
    %cst_23 = arith.constant 0.000000e+00 : f32
    %57 = vector.broadcast %cst_23 : f32 to vector<2x32xf32>
    %c0_24 = arith.constant 0 : index
    %c0_25 = arith.constant 0 : index
    %58 = vector.load %arg9[%c0_24, %c0_25] : memref<1x32xf32, #tpu.memory_space<vmem>>, vector<1x32xf32>
    %59 = vector.broadcast %58 : vector<1x32xf32> to vector<2x32xf32>
    %60 = arith.addf %57, %59 : vector<2x32xf32>
    %c0_26 = arith.constant 0 : index
    %c0_27 = arith.constant 0 : index
    %61 = vector.load %arg6[%c0_26, %c0_27] : memref<2x32xf32, #tpu.memory_space<vmem>>, vector<1x32xf32>
    %c0_28 = arith.constant 0 : index
    %c0_29 = arith.constant 0 : index
    %62 = vector.load %arg8[%c0_28, %c0_29] : memref<2x32xf32, #tpu.memory_space<vmem>>, vector<1x32xf32>
    %63 = vector.broadcast %61 : vector<1x32xf32> to vector<2x32xf32>
    %64 = arith.mulf %56, %63 : vector<2x32xf32>
    %cst_30 = arith.constant dense<0.000000e+00> : vector<2xf32>
    %65 = vector.multi_reduction <add>, %64, %cst_30 [1] : vector<2x32xf32> to vector<2xf32>
    %66 = vector.shape_cast %65 : vector<2xf32> to vector<2x1xf32>
    %c0_31 = arith.constant 0 : index
    %67 = memref.load %arg7[%c0_31] : memref<2xf32, #tpu.memory_space<smem>>
    %68 = vector.broadcast %67 : f32 to vector<2x1xf32>
    %69 = arith.addf %66, %68 : vector<2x1xf32>
    %cst_32 = arith.constant 0.000000e+00 : f32
    %70 = vector.broadcast %cst_32 : f32 to vector<2x1xf32>
    %71 = arith.maximumf %69, %70 : vector<2x1xf32>
    %72 = vector.broadcast %71 : vector<2x1xf32> to vector<2x32xf32>
    %73 = vector.broadcast %62 : vector<1x32xf32> to vector<2x32xf32>
    %74 = arith.mulf %72, %73 : vector<2x32xf32>
    %75 = arith.addf %60, %74 : vector<2x32xf32>
    %c1_33 = arith.constant 1 : index
    %c0_34 = arith.constant 0 : index
    %76 = vector.load %arg6[%c1_33, %c0_34] : memref<2x32xf32, #tpu.memory_space<vmem>>, vector<1x32xf32>
    %c1_35 = arith.constant 1 : index
    %c0_36 = arith.constant 0 : index
    %77 = vector.load %arg8[%c1_35, %c0_36] : memref<2x32xf32, #tpu.memory_space<vmem>>, vector<1x32xf32>
    %78 = vector.broadcast %76 : vector<1x32xf32> to vector<2x32xf32>
    %79 = arith.mulf %56, %78 : vector<2x32xf32>
    %cst_37 = arith.constant dense<0.000000e+00> : vector<2xf32>
    %80 = vector.multi_reduction <add>, %79, %cst_37 [1] : vector<2x32xf32> to vector<2xf32>
    %81 = vector.shape_cast %80 : vector<2xf32> to vector<2x1xf32>
    %c1_38 = arith.constant 1 : index
    %82 = memref.load %arg7[%c1_38] : memref<2xf32, #tpu.memory_space<smem>>
    %83 = vector.broadcast %82 : f32 to vector<2x1xf32>
    %84 = arith.addf %81, %83 : vector<2x1xf32>
    %cst_39 = arith.constant 0.000000e+00 : f32
    %85 = vector.broadcast %cst_39 : f32 to vector<2x1xf32>
    %86 = arith.maximumf %84, %85 : vector<2x1xf32>
    %87 = vector.broadcast %86 : vector<2x1xf32> to vector<2x32xf32>
    %88 = vector.broadcast %77 : vector<1x32xf32> to vector<2x32xf32>
    %89 = arith.mulf %87, %88 : vector<2x32xf32>
    %90 = arith.addf %75, %89 : vector<2x32xf32>
    %91 = arith.negf %90 : vector<2x32xf32>
    %92 = math.exp %91 : vector<2x32xf32>
    %cst_40 = arith.constant 1.000000e+00 : f32
    %93 = vector.broadcast %cst_40 : f32 to vector<2x32xf32>
    %94 = arith.addf %93, %92 : vector<2x32xf32>
    %95 = arith.divf %93, %94 : vector<2x32xf32>
    %96 = vector.shape_cast %95 : vector<2x32xf32> to vector<2x32x1xf32>
    %97 = vector.broadcast %96 : vector<2x32x1xf32> to vector<2x32x128xf32>
    %98 = arith.mulf %53, %97 : vector<2x32x128xf32>
    %cst_41 = arith.constant dense<0xFF800000> : vector<2x128xf32>
    %99 = vector.multi_reduction <maximumf>, %98, %cst_41 [1] : vector<2x32x128xf32> to vector<2x128xf32>
    %100 = vector.shape_cast %99 : vector<2x128xf32> to vector<2x1x128xf32>
    %cst_42 = arith.constant dense<0.000000e+00> : vector<2x128xf32>
    %101 = vector.multi_reduction <add>, %98, %cst_42 [1] : vector<2x32x128xf32> to vector<2x128xf32>
    %102 = vector.shape_cast %101 : vector<2x128xf32> to vector<2x1x128xf32>
    %cst_43 = arith.constant 3.200000e+01 : f32
    %103 = vector.broadcast %cst_43 : f32 to vector<2x1x128xf32>
    %104 = arith.divf %102, %103 : vector<2x1x128xf32>
    %105 = tpu.concatenate %100, %104 in 1 : vector<2x1x128xf32>, vector<2x1x128xf32> -> vector<2x2x128xf32>
    %cst_44 = arith.constant 0.000000e+00 : f32
    %106 = vector.broadcast %cst_44 : f32 to vector<2x2x128xf32>
    %c3_i32 = arith.constant 3 : i32
    %107 = tpu.dynamic_rotate %105 by %c3_i32 dim 2 : vector<2x2x128xf32>, i32 -> vector<2x2x128xf32>
    %c0_45 = arith.constant 0 : index
    %c0_46 = arith.constant 0 : index
    %c0_47 = arith.constant 0 : index
    %108 = vector.load %arg10[%c0_45, %c0_46, %c0_47] : memref<7x2x128xf32, #tpu.memory_space<vmem>>, vector<1x2x128xf32>
    %109 = vector.shape_cast %108 : vector<1x2x128xf32> to vector<2x128xf32>
    %110 = vector.shape_cast %109 : vector<2x128xf32> to vector<1x2x128xf32>
    %111 = vector.broadcast %110 : vector<1x2x128xf32> to vector<2x2x128xf32>
    %112 = arith.mulf %111, %107 : vector<2x2x128xf32>
    %113 = arith.addf %106, %112 : vector<2x2x128xf32>
    %c2_i32_48 = arith.constant 2 : i32
    %114 = tpu.dynamic_rotate %105 by %c2_i32_48 dim 2 : vector<2x2x128xf32>, i32 -> vector<2x2x128xf32>
    %c1_49 = arith.constant 1 : index
    %c0_50 = arith.constant 0 : index
    %c0_51 = arith.constant 0 : index
    %115 = vector.load %arg10[%c1_49, %c0_50, %c0_51] : memref<7x2x128xf32, #tpu.memory_space<vmem>>, vector<1x2x128xf32>
    %116 = vector.shape_cast %115 : vector<1x2x128xf32> to vector<2x128xf32>
    %117 = vector.shape_cast %116 : vector<2x128xf32> to vector<1x2x128xf32>
    %118 = vector.broadcast %117 : vector<1x2x128xf32> to vector<2x2x128xf32>
    %119 = arith.mulf %118, %114 : vector<2x2x128xf32>
    %120 = arith.addf %113, %119 : vector<2x2x128xf32>
    %c1_i32_52 = arith.constant 1 : i32
    %121 = tpu.dynamic_rotate %105 by %c1_i32_52 dim 2 : vector<2x2x128xf32>, i32 -> vector<2x2x128xf32>
    %c2_53 = arith.constant 2 : index
    %c0_54 = arith.constant 0 : index
    %c0_55 = arith.constant 0 : index
    %122 = vector.load %arg10[%c2_53, %c0_54, %c0_55] : memref<7x2x128xf32, #tpu.memory_space<vmem>>, vector<1x2x128xf32>
    %123 = vector.shape_cast %122 : vector<1x2x128xf32> to vector<2x128xf32>
    %124 = vector.shape_cast %123 : vector<2x128xf32> to vector<1x2x128xf32>
    %125 = vector.broadcast %124 : vector<1x2x128xf32> to vector<2x2x128xf32>
    %126 = arith.mulf %125, %121 : vector<2x2x128xf32>
    %127 = arith.addf %120, %126 : vector<2x2x128xf32>
    %c3_56 = arith.constant 3 : index
    %c0_57 = arith.constant 0 : index
    %c0_58 = arith.constant 0 : index
    %128 = vector.load %arg10[%c3_56, %c0_57, %c0_58] : memref<7x2x128xf32, #tpu.memory_space<vmem>>, vector<1x2x128xf32>
    %129 = vector.shape_cast %128 : vector<1x2x128xf32> to vector<2x128xf32>
    %130 = vector.shape_cast %129 : vector<2x128xf32> to vector<1x2x128xf32>
    %131 = vector.broadcast %130 : vector<1x2x128xf32> to vector<2x2x128xf32>
    %132 = arith.mulf %131, %105 : vector<2x2x128xf32>
    %133 = arith.addf %127, %132 : vector<2x2x128xf32>
    %c127_i32_59 = arith.constant 127 : i32
    %134 = tpu.dynamic_rotate %105 by %c127_i32_59 dim 2 : vector<2x2x128xf32>, i32 -> vector<2x2x128xf32>
    %c4_60 = arith.constant 4 : index
    %c0_61 = arith.constant 0 : index
    %c0_62 = arith.constant 0 : index
    %135 = vector.load %arg10[%c4_60, %c0_61, %c0_62] : memref<7x2x128xf32, #tpu.memory_space<vmem>>, vector<1x2x128xf32>
    %136 = vector.shape_cast %135 : vector<1x2x128xf32> to vector<2x128xf32>
    %137 = vector.shape_cast %136 : vector<2x128xf32> to vector<1x2x128xf32>
    %138 = vector.broadcast %137 : vector<1x2x128xf32> to vector<2x2x128xf32>
    %139 = arith.mulf %138, %134 : vector<2x2x128xf32>
    %140 = arith.addf %133, %139 : vector<2x2x128xf32>
    %c126_i32_63 = arith.constant 126 : i32
    %141 = tpu.dynamic_rotate %105 by %c126_i32_63 dim 2 : vector<2x2x128xf32>, i32 -> vector<2x2x128xf32>
    %c5 = arith.constant 5 : index
    %c0_64 = arith.constant 0 : index
    %c0_65 = arith.constant 0 : index
    %142 = vector.load %arg10[%c5, %c0_64, %c0_65] : memref<7x2x128xf32, #tpu.memory_space<vmem>>, vector<1x2x128xf32>
    %143 = vector.shape_cast %142 : vector<1x2x128xf32> to vector<2x128xf32>
    %144 = vector.shape_cast %143 : vector<2x128xf32> to vector<1x2x128xf32>
    %145 = vector.broadcast %144 : vector<1x2x128xf32> to vector<2x2x128xf32>
    %146 = arith.mulf %145, %141 : vector<2x2x128xf32>
    %147 = arith.addf %140, %146 : vector<2x2x128xf32>
    %c125_i32 = arith.constant 125 : i32
    %148 = tpu.dynamic_rotate %105 by %c125_i32 dim 2 : vector<2x2x128xf32>, i32 -> vector<2x2x128xf32>
    %c6 = arith.constant 6 : index
    %c0_66 = arith.constant 0 : index
    %c0_67 = arith.constant 0 : index
    %149 = vector.load %arg10[%c6, %c0_66, %c0_67] : memref<7x2x128xf32, #tpu.memory_space<vmem>>, vector<1x2x128xf32>
    %150 = vector.shape_cast %149 : vector<1x2x128xf32> to vector<2x128xf32>
    %151 = vector.shape_cast %150 : vector<2x128xf32> to vector<1x2x128xf32>
    %152 = vector.broadcast %151 : vector<1x2x128xf32> to vector<2x2x128xf32>
    %153 = arith.mulf %152, %148 : vector<2x2x128xf32>
    %154 = arith.addf %147, %153 : vector<2x2x128xf32>
    %cst_68 = arith.constant dense<0.000000e+00> : vector<2x128xf32>
    %155 = vector.multi_reduction <add>, %154, %cst_68 [1] : vector<2x2x128xf32> to vector<2x128xf32>
    %156 = vector.shape_cast %155 : vector<2x128xf32> to vector<2x1x128xf32>
    %c0_69 = arith.constant 0 : index
    %157 = memref.load %arg11[%c0_69] : memref<1xf32, #tpu.memory_space<smem>>
    %158 = vector.broadcast %157 : f32 to vector<2x1x128xf32>
    %159 = arith.addf %156, %158 : vector<2x1x128xf32>
    %160 = arith.negf %159 : vector<2x1x128xf32>
    %161 = math.exp %160 : vector<2x1x128xf32>
    %cst_70 = arith.constant 1.000000e+00 : f32
    %162 = vector.broadcast %cst_70 : f32 to vector<2x1x128xf32>
    %163 = arith.addf %162, %161 : vector<2x1x128xf32>
    %164 = arith.divf %162, %163 : vector<2x1x128xf32>
    %165 = vector.broadcast %164 : vector<2x1x128xf32> to vector<2x32x128xf32>
    %166 = arith.mulf %98, %165 : vector<2x32x128xf32>
    %c0_71 = arith.constant 0 : index
    %c0_72 = arith.constant 0 : index
    %c0_73 = arith.constant 0 : index
    %167 = vector.load %arg12[%c0_71, %c0_72, %c0_73] : memref<2x32x128xf32, #tpu.memory_space<vmem>>, vector<2x32x128xf32>
    tpu.vector_store %arg12[%c0_71, %c0_72, %c0_73], %166 {strides = array<i32>} : memref<2x32x128xf32, #tpu.memory_space<vmem>>, vector<2x32x128xf32>,
    return
  }
  func.func @transform_0(%arg0: i32) -> (i32, i32, i32) {
    %c0_i32 = arith.constant 0 : i32
    %c0_i32_0 = arith.constant 0 : i32
    %c0_i32_1 = arith.constant 0 : i32
    return %arg0, %c0_i32, %c0_i32_0 : i32, i32, i32
  }
  func.func @transform_1(%arg0: i32) -> (i32, i32, i32) {
    %c0_i32 = arith.constant 0 : i32
    %c0_i32_0 = arith.constant 0 : i32
    %c0_i32_1 = arith.constant 0 : i32
    %c0_i32_2 = arith.constant 0 : i32
    return %c0_i32, %c0_i32_0, %c0_i32_1 : i32, i32, i32
  }
  func.func @transform_2(%arg0: i32) -> (i32, i32) {
    %c0_i32 = arith.constant 0 : i32
    %c0_i32_0 = arith.constant 0 : i32
    %c0_i32_1 = arith.constant 0 : i32
    return %c0_i32, %c0_i32_0 : i32, i32
  }
  func.func @transform_3(%arg0: i32) -> (i32, i32) {
    %c0_i32 = arith.constant 0 : i32
    %c0_i32_0 = arith.constant 0 : i32
    %c0_i32_1 = arith.constant 0 : i32
    return %c0_i32, %c0_i32_0 : i32, i32
  }
  func.func @transform_4(%arg0: i32) -> (i32, i32) {
    %c0_i32 = arith.constant 0 : i32
    %c0_i32_0 = arith.constant 0 : i32
    %c0_i32_1 = arith.constant 0 : i32
    return %c0_i32, %c0_i32_0 : i32, i32
  }
  func.func @transform_5(%arg0: i32) -> (i32, i32) {
    %c0_i32 = arith.constant 0 : i32
    %c0_i32_0 = arith.constant 0 : i32
    %c0_i32_1 = arith.constant 0 : i32
    return %c0_i32, %c0_i32_0 : i32, i32
  }
  func.func @transform_6(%arg0: i32) -> i32 {
    %c0_i32 = arith.constant 0 : i32
    %c0_i32_0 = arith.constant 0 : i32
    return %c0_i32 : i32
  }
  func.func @transform_7(%arg0: i32) -> (i32, i32) {
    %c0_i32 = arith.constant 0 : i32
    %c0_i32_0 = arith.constant 0 : i32
    %c0_i32_1 = arith.constant 0 : i32
    return %c0_i32, %c0_i32_0 : i32, i32
  }
  func.func @transform_8(%arg0: i32) -> (i32, i32) {
    %c0_i32 = arith.constant 0 : i32
    %c0_i32_0 = arith.constant 0 : i32
    %c0_i32_1 = arith.constant 0 : i32
    return %c0_i32, %c0_i32_0 : i32, i32
  }
  func.func @transform_9(%arg0: i32) -> (i32, i32, i32) {
    %c0_i32 = arith.constant 0 : i32
    %c0_i32_0 = arith.constant 0 : i32
    %c0_i32_1 = arith.constant 0 : i32
    %c0_i32_2 = arith.constant 0 : i32
    return %c0_i32, %c0_i32_0, %c0_i32_1 : i32, i32, i32
  }
  func.func @transform_10(%arg0: i32) -> i32 {
    %c0_i32 = arith.constant 0 : i32
    %c0_i32_0 = arith.constant 0 : i32
    return %c0_i32 : i32
  }
  func.func @transform_11(%arg0: i32) -> (i32, i32, i32) {
    %c0_i32 = arith.constant 0 : i32
    %c0_i32_0 = arith.constant 0 : i32
    %c0_i32_1 = arith.constant 0 : i32
    return %arg0, %c0_i32, %c0_i32_0 : i32, i32, i32
  }
}

</mosaic_0001>

<llo_original>
// kernel: tpu_custom_call.1
$region0: #{tpu_custom_call.1}
  #allocation0 [shape = 'u32[]', space=smem, size = 0x4, offset = 0x4, fixed_abs, tag = 'smem constant byte address 0x4 - core index']
  #allocation1 [shape = 'u32[144,128]{1,0:T(1,128)}', space=vmem, size = 0x12000, scoped, tag = 'internal scratch']
  #allocation2 [shape = 'f32[1]{0:T(128)S(6)}', space=smem, size = 0x200, scoped, tag = 'scoped memory for tpu_custom_call.1']
  %s0 = inlined_call_operand.hbm [shape: f32[4,16,128], index: 0, kind: input, shape index: {}]
  %s1 = inlined_call_operand.vmem [shape: f32[5,16,128], index: 1, kind: input, shape index: {}]
  %s2 = inlined_call_operand.vmem [shape: f32[16,1], index: 2, kind: input, shape index: {}]
  %s3 = inlined_call_operand.vmem [shape: f32[32,16], index: 3, kind: input, shape index: {}]
  %s4 = inlined_call_operand.vmem [shape: f32[32,1], index: 4, kind: input, shape index: {}]
  %s5 = inlined_call_operand.vmem [shape: f32[2,32], index: 5, kind: input, shape index: {}]
  %s6 = inlined_call_operand.vmem [shape: f32[2], index: 6, kind: input, shape index: {}]
  %s7 = inlined_call_operand.vmem [shape: f32[2,32], index: 7, kind: input, shape index: {}]
  %s8 = inlined_call_operand.vmem [shape: f32[1,32], index: 8, kind: input, shape index: {}]
  %s9 = inlined_call_operand.vmem [shape: f32[7,2,128], index: 9, kind: input, shape index: {}]
  %s10 = inlined_call_operand.<no memory space> [shape: f32[1], index: 10, kind: input, shape index: {}]
  %s11 = inlined_call_operand.hbm [shape: f32[4,32,128], index: 11, kind: output, shape index: {}]
  %s12 = sld [smem:[#allocation0]]
  $region85: #{tpu_custom_call.1} parent=0
    _
  %s14 = ssub.s32 1, %s12
  %s15 = scalar_select 0, %s14, %s12
  %16 = sst [smem:[#allocation2]] %s10
  $region1: #{tpu_custom_call.1} parent=0
    #allocation3 [shape = 'u8[32768]{0}', space=vmem, size = 0x8000, scoped, tag = 'input window, operand 0']
    #allocation4 [shape = 's32[2]{0}', space=sflag, size = 0x8, scoped, tag = 'scoped memory for tpu_custom_call.1']
    #allocation5 [shape = 's32[2]{0}', space=sflag, size = 0x8, scoped, tag = 'scoped memory for tpu_custom_call.1']
    #allocation6 [shape = 's32[2]{0}', space=sflag, size = 0x8, scoped, tag = 'scoped memory for tpu_custom_call.1']
    #allocation7 [shape = 'u8[512]{0}', space=smem, size = 0x200, scoped, tag = 'input window, operand 6, single buffered']
    #allocation8 [shape = 'u8[65536]{0}', space=vmem, size = 0x10000, scoped, tag = 'output window, operand 0']
    %17 = vsyncpa [#allocation4], 0
    %s18 = scalar_lea.sflag [#allocation4], 1
    %19 = vsyncpa %s18, 0
    %20 = vsyncpa [#allocation6], 0
    %21 = vsyncpa [#allocation5], 0
    %s22 = scalar_lea.sflag [#allocation5], 1
    %23 = vsyncpa %s22, 0
    loop: start=0, step=1, limit=4
    $region2: #{tpu_custom_call.1} parent=1 // loop_pre_header
      _
    $region3: #{tpu_custom_call.1} parent=1 // loop_header
      %s25 = sphi 0, %s29
      %p26 = scmp.ge.s32.totalorder %s25, 4
      %s35 = sphi 0, %s37
      %s38 = sphi 0, %s35
      %s39 = sphi 0, %s38
      %s55 = sphi 0, %s39
      %s59 = sphi 0, %s59
      %s61 = sphi 0, %s59
      %s62 = sphi 0, %s61
      %s76 = sphi 0, %s62
      %s80 = sphi 0, %s80
      %s82 = sphi 0, %s80
      %s83 = sphi 0, %s82
      %s97 = sphi 0, %s83
      %s101 = sphi 0, %s101
      %s103 = sphi 0, %s101
      %s104 = sphi 0, %s103
      %s118 = sphi 0, %s104
      %s122 = sphi 0, %s122
      %s124 = sphi 0, %s122
      %s125 = sphi 0, %s124
      %s139 = sphi 0, %s125
      %s143 = sphi 0, %s143
      %s145 = sphi 0, %s143
      %s146 = sphi 0, %s145
      %s160 = sphi 0, %s146
      %s164 = sphi 0, %s164
      %s166 = sphi 0, %s164
      %s167 = sphi 0, %s166
      %s181 = sphi 0, %s167
      %s185 = sphi 0, %s185
      %s187 = sphi 0, %s185
      %s188 = sphi 0, %s187
      %s202 = sphi 0, %s188
      %s206 = sphi 0, %s206
      %s208 = sphi 0, %s206
      %s209 = sphi 0, %s208
      %s223 = sphi 0, %s209
      %s227 = sphi 0, %s227
      %s229 = sphi 0, %s227
      %s230 = sphi 0, %s229
      %s244 = sphi 0, %s230
      %s248 = sphi 0, %s248
      %s250 = sphi 0, %s248
      %s251 = sphi 0, %s250
      %s265 = sphi 0, %s251
      %s271 = sphi 0, %s273
      %s274 = sphi 0, %s271
      %s275 = sphi 0, %s274
      %s291 = sphi 0, %s275
    $region4: #{tpu_custom_call.1} parent=1 // loop_header_branch
      %28 = sbr.rel (%p26) target = $region8
    $region5: #{tpu_custom_call.1} parent=1 // loop_body
      %s30 = ssub.s32 %s25, 1
      %s31 = ssub.s32 %s25, 2
      %s32 = sadd.s32 %s25, 1
      %s33 = ssub.s32 %s25, %s32
      %p34 = scmp.eq.s32.totalorder %s33, 0
      %s36 = sadd.s32 %s35, 1
      %s37 = scalar_select %p34, %s35, %s36
      %p40 = pneg %p34
      %p41 = scmp.eq.s32.totalorder %s25, 1
      %p42 = por %p40, %p41
      %p43 = scmp.ne.s32.totalorder %s35, %s38
      %p44 = scmp.eq.s32.totalorder %s25, 0
      %p45 = por %p43, %p44
      %p46 = scmp.ne.s32.totalorder %s35, %s38
      %p47 = scmp.eq.s32.totalorder %s30, 1
      %p48 = por %p46, %p47
      %p49 = scmp.ne.s32.totalorder %s38, %s39
      %p50 = scmp.eq.s32.totalorder %s30, 0
      %p51 = por %p49, %p50
      %p52 = scmp.ne.s32.totalorder %s38, %s39
      %p53 = scmp.eq.s32.totalorder %s31, 1
      %p54 = por %p52, %p53
      %p56 = scmp.ne.s32.totalorder %s39, %s55
      %p57 = scmp.eq.s32.totalorder %s31, 0
      %p58 = por %p56, %p57
      %s60 = sadd.s32 %s59, 1
      %p63 = scmp.eq.s32.totalorder %s25, 1
      %p64 = scmp.ne.s32.totalorder %s59, %s61
      %p65 = scmp.eq.s32.totalorder %s25, 0
      %p66 = por %p64, %p65
      %p67 = scmp.ne.s32.totalorder %s59, %s61
      %p68 = scmp.eq.s32.totalorder %s30, 1
      %p69 = por %p67, %p68
      %p70 = scmp.ne.s32.totalorder %s61, %s62
      %p71 = scmp.eq.s32.totalorder %s30, 0
      %p72 = por %p70, %p71
      %p73 = scmp.ne.s32.totalorder %s61, %s62
      %p74 = scmp.eq.s32.totalorder %s31, 1
      %p75 = por %p73, %p74
      %p77 = scmp.ne.s32.totalorder %s62, %s76
      %p78 = scmp.eq.s32.totalorder %s31, 0
      %p79 = por %p77, %p78
      %s81 = sadd.s32 %s80, 1
      %p84 = scmp.eq.s32.totalorder %s25, 1
      %p85 = scmp.ne.s32.totalorder %s80, %s82
      %p86 = scmp.eq.s32.totalorder %s25, 0
      %p87 = por %p85, %p86
      %p88 = scmp.ne.s32.totalorder %s80, %s82
      %p89 = scmp.eq.s32.totalorder %s30, 1
      %p90 = por %p88, %p89
      %p91 = scmp.ne.s32.totalorder %s82, %s83
      %p92 = scmp.eq.s32.totalorder %s30, 0
      %p93 = por %p91, %p92
      %p94 = scmp.ne.s32.totalorder %s82, %s83
      %p95 = scmp.eq.s32.totalorder %s31, 1
      %p96 = por %p94, %p95
      %p98 = scmp.ne.s32.totalorder %s83, %s97
      %p99 = scmp.eq.s32.totalorder %s31, 0
      %p100 = por %p98, %p99
      %s102 = sadd.s32 %s101, 1
      %p105 = scmp.eq.s32.totalorder %s25, 1
      %p106 = scmp.ne.s32.totalorder %s101, %s103
      %p107 = scmp.eq.s32.totalorder %s25, 0
      %p108 = por %p106, %p107
      %p109 = scmp.ne.s32.totalorder %s101, %s103
      %p110 = scmp.eq.s32.totalorder %s30, 1
      %p111 = por %p109, %p110
      %p112 = scmp.ne.s32.totalorder %s103, %s104
      %p113 = scmp.eq.s32.totalorder %s30, 0
      %p114 = por %p112, %p113
      %p115 = scmp.ne.s32.totalorder %s103, %s104
      %p116 = scmp.eq.s32.totalorder %s31, 1
      %p117 = por %p115, %p116
      %p119 = scmp.ne.s32.totalorder %s104, %s118
      %p120 = scmp.eq.s32.totalorder %s31, 0
      %p121 = por %p119, %p120
      %s123 = sadd.s32 %s122, 1
      %p126 = scmp.eq.s32.totalorder %s25, 1
      %p127 = scmp.ne.s32.totalorder %s122, %s124
      %p128 = scmp.eq.s32.totalorder %s25, 0
      %p129 = por %p127, %p128
      %p130 = scmp.ne.s32.totalorder %s122, %s124
      %p131 = scmp.eq.s32.totalorder %s30, 1
      %p132 = por %p130, %p131
      %p133 = scmp.ne.s32.totalorder %s124, %s125
      %p134 = scmp.eq.s32.totalorder %s30, 0
      %p135 = por %p133, %p134
      %p136 = scmp.ne.s32.totalorder %s124, %s125
      %p137 = scmp.eq.s32.totalorder %s31, 1
      %p138 = por %p136, %p137
      %p140 = scmp.ne.s32.totalorder %s125, %s139
      %p141 = scmp.eq.s32.totalorder %s31, 0
      %p142 = por %p140, %p141
      %s144 = sadd.s32 %s143, 1
      %p147 = scmp.eq.s32.totalorder %s25, 1
      %p148 = scmp.ne.s32.totalorder %s143, %s145
      %p149 = scmp.eq.s32.totalorder %s25, 0
      %p150 = por %p148, %p149
      %p151 = scmp.ne.s32.totalorder %s143, %s145
      %p152 = scmp.eq.s32.totalorder %s30, 1
      %p153 = por %p151, %p152
      %p154 = scmp.ne.s32.totalorder %s145, %s146
      %p155 = scmp.eq.s32.totalorder %s30, 0
      %p156 = por %p154, %p155
      %p157 = scmp.ne.s32.totalorder %s145, %s146
      %p158 = scmp.eq.s32.totalorder %s31, 1
      %p159 = por %p157, %p158
      %p161 = scmp.ne.s32.totalorder %s146, %s160
      %p162 = scmp.eq.s32.totalorder %s31, 0
      %p163 = por %p161, %p162
      %s165 = sadd.s32 %s164, 1
      %p168 = scmp.eq.s32.totalorder %s25, 1
      %p169 = scmp.ne.s32.totalorder %s164, %s166
      %p170 = scmp.eq.s32.totalorder %s25, 0
      %p171 = por %p169, %p170
      %p172 = scmp.ne.s32.totalorder %s164, %s166
      %p173 = scmp.eq.s32.totalorder %s30, 1
      %p174 = por %p172, %p173
      %p175 = scmp.ne.s32.totalorder %s166, %s167
      %p176 = scmp.eq.s32.totalorder %s30, 0
      %p177 = por %p175, %p176
      %p178 = scmp.ne.s32.totalorder %s166, %s167
      %p179 = scmp.eq.s32.totalorder %s31, 1
      %p180 = por %p178, %p179
      %p182 = scmp.ne.s32.totalorder %s167, %s181
      %p183 = scmp.eq.s32.totalorder %s31, 0
      %p184 = por %p182, %p183
      %s186 = sadd.s32 %s185, 1
      %p189 = scmp.eq.s32.totalorder %s25, 1
      %p190 = scmp.ne.s32.totalorder %s185, %s187
      %p191 = scmp.eq.s32.totalorder %s25, 0
      %p192 = por %p190, %p191
      %p193 = scmp.ne.s32.totalorder %s185, %s187
      %p194 = scmp.eq.s32.totalorder %s30, 1
      %p195 = por %p193, %p194
      %p196 = scmp.ne.s32.totalorder %s187, %s188
      %p197 = scmp.eq.s32.totalorder %s30, 0
      %p198 = por %p196, %p197
      %p199 = scmp.ne.s32.totalorder %s187, %s188
      %p200 = scmp.eq.s32.totalorder %s31, 1
      %p201 = por %p199, %p200
      %p203 = scmp.ne.s32.totalorder %s188, %s202
      %p204 = scmp.eq.s32.totalorder %s31, 0
      %p205 = por %p203, %p204
      %s207 = sadd.s32 %s206, 1
      %p210 = scmp.eq.s32.totalorder %s25, 1
      %p211 = scmp.ne.s32.totalorder %s206, %s208
      %p212 = scmp.eq.s32.totalorder %s25, 0
      %p213 = por %p211, %p212
      %p214 = scmp.ne.s32.totalorder %s206, %s208
      %p215 = scmp.eq.s32.totalorder %s30, 1
      %p216 = por %p214, %p215
      %p217 = scmp.ne.s32.totalorder %s208, %s209
      %p218 = scmp.eq.s32.totalorder %s30, 0
      %p219 = por %p217, %p218
      %p220 = scmp.ne.s32.totalorder %s208, %s209
      %p221 = scmp.eq.s32.totalorder %s31, 1
      %p222 = por %p220, %p221
      %p224 = scmp.ne.s32.totalorder %s209, %s223
      %p225 = scmp.eq.s32.totalorder %s31, 0
      %p226 = por %p224, %p225
      %s228 = sadd.s32 %s227, 1
      %p231 = scmp.eq.s32.totalorder %s25, 1
      %p232 = scmp.ne.s32.totalorder %s227, %s229
      %p233 = scmp.eq.s32.totalorder %s25, 0
      %p234 = por %p232, %p233
      %p235 = scmp.ne.s32.totalorder %s227, %s229
      %p236 = scmp.eq.s32.totalorder %s30, 1
      %p237 = por %p235, %p236
      %p238 = scmp.ne.s32.totalorder %s229, %s230
      %p239 = scmp.eq.s32.totalorder %s30, 0
      %p240 = por %p238, %p239
      %p241 = scmp.ne.s32.totalorder %s229, %s230
      %p242 = scmp.eq.s32.totalorder %s31, 1
      %p243 = por %p241, %p242
      %p245 = scmp.ne.s32.totalorder %s230, %s244
      %p246 = scmp.eq.s32.totalorder %s31, 0
      %p247 = por %p245, %p246
      %s249 = sadd.s32 %s248, 1
      %p252 = scmp.eq.s32.totalorder %s25, 1
      %p253 = scmp.ne.s32.totalorder %s248, %s250
      %p254 = scmp.eq.s32.totalorder %s25, 0
      %p255 = por %p253, %p254
      %p256 = scmp.ne.s32.totalorder %s248, %s250
      %p257 = scmp.eq.s32.totalorder %s30, 1
      %p258 = por %p256, %p257
      %p259 = scmp.ne.s32.totalorder %s250, %s251
      %p260 = scmp.eq.s32.totalorder %s30, 0
      %p261 = por %p259, %p260
      %p262 = scmp.ne.s32.totalorder %s250, %s251
      %p263 = scmp.eq.s32.totalorder %s31, 1
      %p264 = por %p262, %p263
      %p266 = scmp.ne.s32.totalorder %s251, %s265
      %p267 = scmp.eq.s32.totalorder %s31, 0
      %p268 = por %p266, %p267
      %s269 = ssub.s32 %s25, %s32
      %p270 = scmp.eq.s32.totalorder %s269, 0
      %s272 = sadd.s32 %s271, 1
      %s273 = scalar_select %p270, %s271, %s272
      %p276 = pneg %p270
      %p277 = scmp.eq.s32.totalorder %s25, 1
      %p278 = por %p276, %p277
      %p279 = scmp.ne.s32.totalorder %s271, %s274
      %p280 = scmp.eq.s32.totalorder %s25, 0
      %p281 = por %p279, %p280
      %p282 = scmp.ne.s32.totalorder %s271, %s274
      %p283 = scmp.eq.s32.totalorder %s30, 1
      %p284 = por %p282, %p283
      %p285 = scmp.ne.s32.totalorder %s274, %s275
      %p286 = scmp.eq.s32.totalorder %s30, 0
      %p287 = por %p285, %p286
      %p288 = scmp.ne.s32.totalorder %s274, %s275
      %p289 = scmp.eq.s32.totalorder %s31, 1
      %p290 = por %p288, %p289
      %p292 = scmp.ne.s32.totalorder %s275, %s291
      %p293 = scmp.eq.s32.totalorder %s31, 0
      %p294 = por %p292, %p293
      %p295 = scmp.le.s32.totalorder 1, %s25
      %p296 = scmp.lt.s32.totalorder %s25, 3
      %p297 = pnand %p295, %p296
      %p298 = pneg %p297
      // Predicated region
      $region9: #{tpu_custom_call.1} parent=5 // pred_check
        _
      $region10: #{tpu_custom_call.1} parent=5 // pred_check_branch
        %300 = sbr.rel (%p297) target = $region12
      $region11: #{tpu_custom_call.1} parent=5 // pred_region
        %s301 = ssub.s32 %s25, 1
        // Predicated region
        $region13: #{tpu_custom_call.1} parent=11 // pred_check
          %p302 = pneg %p72
        $region14: #{tpu_custom_call.1} parent=11 // pred_check_branch
          %304 = sbr.rel (%p302) target = $region16
        $region15: #{tpu_custom_call.1} parent=11 // pred_region
          _
        $region16: #{tpu_custom_call.1} parent=11 // pred_fallthru
          _
        // Predicated region
        $region17: #{tpu_custom_call.1} parent=11 // pred_check
          %p305 = pneg %p93
        $region18: #{tpu_custom_call.1} parent=11 // pred_check_branch
          %307 = sbr.rel (%p305) target = $region20
        $region19: #{tpu_custom_call.1} parent=11 // pred_region
          _
        $region20: #{tpu_custom_call.1} parent=11 // pred_fallthru
          _
        // Predicated region
        $region21: #{tpu_custom_call.1} parent=11 // pred_check
          %p308 = pneg %p114
        $region22: #{tpu_custom_call.1} parent=11 // pred_check_branch
          %310 = sbr.rel (%p308) target = $region24
        $region23: #{tpu_custom_call.1} parent=11 // pred_region
          _
        $region24: #{tpu_custom_call.1} parent=11 // pred_fallthru
          _
        // Predicated region
        $region25: #{tpu_custom_call.1} parent=11 // pred_check
          %p311 = pneg %p135
        $region26: #{tpu_custom_call.1} parent=11 // pred_check_branch
          %313 = sbr.rel (%p311) target = $region28
        $region27: #{tpu_custom_call.1} parent=11 // pred_region
          _
        $region28: #{tpu_custom_call.1} parent=11 // pred_fallthru
          _
        // Predicated region
        $region29: #{tpu_custom_call.1} parent=11 // pred_check
          %p314 = pneg %p156
        $region30: #{tpu_custom_call.1} parent=11 // pred_check_branch
          %316 = sbr.rel (%p314) target = $region32
        $region31: #{tpu_custom_call.1} parent=11 // pred_region
          _
        $region32: #{tpu_custom_call.1} parent=11 // pred_fallthru
          _
        // Predicated region
        $region33: #{tpu_custom_call.1} parent=11 // pred_check
          %p317 = pneg %p177
        $region34: #{tpu_custom_call.1} parent=11 // pred_check_branch
          %319 = sbr.rel (%p317) target = $region36
        $region35: #{tpu_custom_call.1} parent=11 // pred_region
          %s321 = ssub.s32 16, 16
          %322 = vsyncadd [#allocation6], %s321
          %s324 = sshll.u32 %s6, 4
          %s325 = int_to_ptr.vmem [resolvable:$true] %s324
          %327 = dma.vmem_to_smem %s325, 16, [#allocation7], [#allocation6]
        $region36: #{tpu_custom_call.1} parent=11 // pred_fallthru
          _
        // Predicated region
        $region37: #{tpu_custom_call.1} parent=11 // pred_check
          %p328 = pneg %p198
        $region38: #{tpu_custom_call.1} parent=11 // pred_check_branch
          %330 = sbr.rel (%p328) target = $region40
        $region39: #{tpu_custom_call.1} parent=11 // pred_region
          _
        $region40: #{tpu_custom_call.1} parent=11 // pred_fallthru
          _
        // Predicated region
        $region41: #{tpu_custom_call.1} parent=11 // pred_check
          %p331 = pneg %p219
        $region42: #{tpu_custom_call.1} parent=11 // pred_check_branch
          %333 = sbr.rel (%p331) target = $region44
        $region43: #{tpu_custom_call.1} parent=11 // pred_region
          _
        $region44: #{tpu_custom_call.1} parent=11 // pred_fallthru
          _
        // Predicated region
        $region45: #{tpu_custom_call.1} parent=11 // pred_check
          %p334 = pneg %p240
        $region46: #{tpu_custom_call.1} parent=11 // pred_check_branch
          %336 = sbr.rel (%p334) target = $region48
        $region47: #{tpu_custom_call.1} parent=11 // pred_region
          _
        $region48: #{tpu_custom_call.1} parent=11 // pred_fallthru
          _
        // Predicated region
        $region49: #{tpu_custom_call.1} parent=11 // pred_check
          %p337 = pneg %p261
        $region50: #{tpu_custom_call.1} parent=11 // pred_check_branch
          %339 = sbr.rel (%p337) target = $region52
        $region51: #{tpu_custom_call.1} parent=11 // pred_region
          _
        $region52: #{tpu_custom_call.1} parent=11 // pred_fallthru
          _
      $region12: #{tpu_custom_call.1} parent=5 // pred_fallthru
        _
      %p340 = scmp.lt.s32.totalorder %s25, 2
      // Predicated region
      $region53: #{tpu_custom_call.1} parent=5 // pred_check
        %p341 = pneg %p340
      $region54: #{tpu_custom_call.1} parent=5 // pred_check_branch
        %343 = sbr.rel (%p341) target = $region56
      $region55: #{tpu_custom_call.1} parent=5 // pred_region
        // Predicated region
        $region57: #{tpu_custom_call.1} parent=55 // pred_check
          %p344 = pneg %p45
        $region58: #{tpu_custom_call.1} parent=55 // pred_check_branch
          %346 = sbr.rel (%p344) target = $region60
        $region59: #{tpu_custom_call.1} parent=55 // pred_region
          %s347 = sand.u32 %s35, 1
          %s348 = scalar_lea.sflag [#allocation4], %s347
          %s349 = sand.u32 %s35, 1
          %s350 = smul.addr %s349, 32
          %s351 = scalar_lea.vmem [#allocation3], %s350
          %s352 = smul.u32 2, %s25
          %s354 = ssub.s32 512, 512
          %355 = vsyncadd %s348, %s354
          %s356 = smul.addr %s352, 2
          %s357 = smul.addr %s356, 128
          %s358 = scalar_lea.hbm %s0, %s357
          %s359 = sshll.u32 %s351, 4
          %s360 = int_to_ptr.vmem [resolvable:$true] %s359
          %365 = dma.hbm_to_vmem [thread:$0]  %s358, 512, %s360, %s348, 128, 128, 8
        $region60: #{tpu_custom_call.1} parent=55 // pred_fallthru
          _
      $region56: #{tpu_custom_call.1} parent=5 // pred_fallthru
        _
      %p366 = scmp.le.s32.totalorder 1, %s25
      %p367 = scmp.lt.s32.totalorder %s25, 3
      %p368 = pnand %p366, %p367
      %p369 = pneg %p368
      // Predicated region
      $region61: #{tpu_custom_call.1} parent=5 // pred_check
        _
      $region62: #{tpu_custom_call.1} parent=5 // pred_check_branch
        %371 = sbr.rel (%p368) target = $region64
      $region63: #{tpu_custom_call.1} parent=5 // pred_region
        %s372 = ssub.s32 %s25, 1
        %s373 = sand.u32 %s38, 1
        %s374 = scalar_lea.sflag [#allocation4], %s373
        %s375 = sand.u32 %s38, 1
        %s376 = smul.addr %s375, 32
        %s377 = scalar_lea.vmem [#allocation3], %s376
        // Predicated region
        $region65: #{tpu_custom_call.1} parent=63 // pred_check
          %p378 = pneg %p51
        $region66: #{tpu_custom_call.1} parent=63 // pred_check_branch
          %380 = sbr.rel (%p378) target = $region68
        $region67: #{tpu_custom_call.1} parent=63 // pred_region
          %381 = dma.done %s374, 512
        $region68: #{tpu_custom_call.1} parent=63 // pred_fallthru
          _
        // Predicated region
        $region69: #{tpu_custom_call.1} parent=63 // pred_check
          %p382 = pneg %p177
        $region70: #{tpu_custom_call.1} parent=63 // pred_check_branch
          %384 = sbr.rel (%p382) target = $region72
        $region71: #{tpu_custom_call.1} parent=63 // pred_region
          %385 = dma.done [#allocation6], 16
        $region72: #{tpu_custom_call.1} parent=63 // pred_fallthru
          _
        %386 = sfence
        %s387 = sand.u32 %s38, 1
        %s388 = scalar_lea.sflag [#allocation4], %s387
        %s389 = sand.u32 %s38, 1
        %s390 = smul.addr %s389, 32
        %s391 = scalar_lea.vmem [#allocation3], %s390
        %p392 = pneg %p51
        %p393 = pneg %p48
        %p394 = pneg %p72
        %p395 = pneg %p69
        %p396 = pneg %p93
        %p397 = pneg %p90
        %p398 = pneg %p114
        %p399 = pneg %p111
        %p400 = pneg %p135
        %p401 = pneg %p132
        %p402 = pneg %p156
        %p403 = pneg %p153
        %p404 = pneg %p177
        %p405 = pneg %p174
        %p406 = pneg %p198
        %p407 = pneg %p195
        %p408 = pneg %p219
        %p409 = pneg %p216
        %p410 = pneg %p240
        %p411 = pneg %p237
        %p412 = pneg %p261
        %p413 = pneg %p258
        %p414 = pneg %p287
        %p415 = pneg %p284
        %s416 = sand.u32 %s274, 1
        %s417 = scalar_lea.sflag [#allocation5], %s416
        %s418 = sand.u32 %s274, 1
        %s419 = smul.addr %s418, 64
        %s420 = scalar_lea.vmem [#allocation8], %s419
        %s421 = smul.u32 2, %s30
        %s422 = smul.u32 2, %s30
        %v423 = vld [vmem:[%s377] sm:$0xff]
        %v424 = vld [vmem:[%s377 + $0x8] sm:$0xff]
        %v425 = vld [vmem:[%s377 + $0x10] sm:$0xff]
        %v426 = vld [vmem:[%s377 + $0x18] sm:$0xff]
        %427 = vrot.lane.b32.xlu0 %v423, 2
        %v428 = vpop.permute.xlu0 %427
        %429 = vrot.lane.b32.xlu0 %v424, 2
        %v430 = vpop.permute.xlu0 %429
        %431 = vrot.lane.b32.xlu0 %v425, 2
        %v432 = vpop.permute.xlu0 %431
        %433 = vrot.lane.b32.xlu0 %v426, 2
        %v434 = vpop.permute.xlu0 %433
        %v435 = vld [vmem:[%s1] sm:$0xff]
        %v436 = vld [vmem:[%s1 + $0x8] sm:$0xff]
        %v437 = vmul.f32 %v435, %v428
        %v438 = vmul.f32 %v436, %v430
        %v439 = vmul.f32 %v435, %v432
        %v440 = vmul.f32 %v436, %v434
        %v441 = vadd.f32 %v437, 0.0
        %v442 = vadd.f32 %v438, 0.0
        %v443 = vadd.f32 %v439, 0.0
        %v444 = vadd.f32 %v440, 0.0
        %445 = vrot.lane.b32.xlu0 %v423, 1
        %v446 = vpop.permute.xlu0 %445
        %447 = vrot.lane.b32.xlu0 %v424, 1
        %v448 = vpop.permute.xlu0 %447
        %449 = vrot.lane.b32.xlu0 %v425, 1
        %v450 = vpop.permute.xlu0 %449
        %451 = vrot.lane.b32.xlu0 %v426, 1
        %v452 = vpop.permute.xlu0 %451
        %s453 = scalar_lea.vmem %s1, 16
        %v454 = vld [vmem:[%s453] sm:$0xff]
        %v455 = vld [vmem:[%s453 + $0x8] sm:$0xff]
        %v456 = vmul.f32 %v454, %v446
        %v457 = vmul.f32 %v455, %v448
        %v458 = vmul.f32 %v454, %v450
        %v459 = vmul.f32 %v455, %v452
        %v460 = vadd.f32 %v441, %v456
        %v461 = vadd.f32 %v442, %v457
        %v462 = vadd.f32 %v443, %v458
        %v463 = vadd.f32 %v444, %v459
        %s464 = scalar_lea.vmem %s1, 32
        %v465 = vld [vmem:[%s464] sm:$0xff]
        %v466 = vld [vmem:[%s464 + $0x8] sm:$0xff]
        %v467 = vmul.f32 %v465, %v423
        %v468 = vmul.f32 %v466, %v424
        %v469 = vmul.f32 %v465, %v425
        %v470 = vmul.f32 %v466, %v426
        %v471 = vadd.f32 %v460, %v467
        %v472 = vadd.f32 %v461, %v468
        %v473 = vadd.f32 %v462, %v469
        %v474 = vadd.f32 %v463, %v470
        %475 = vrot.lane.b32.xlu0 %v423, 127
        %v476 = vpop.permute.xlu0 %475
        %477 = vrot.lane.b32.xlu0 %v424, 127
        %v478 = vpop.permute.xlu0 %477
        %479 = vrot.lane.b32.xlu0 %v425, 127
        %v480 = vpop.permute.xlu0 %479
        %481 = vrot.lane.b32.xlu0 %v426, 127
        %v482 = vpop.permute.xlu0 %481
        %s483 = scalar_lea.vmem %s1, 48
        %v484 = vld [vmem:[%s483] sm:$0xff]
        %v485 = vld [vmem:[%s483 + $0x8] sm:$0xff]
        %v486 = vmul.f32 %v484, %v476
        %v487 = vmul.f32 %v485, %v478
        %v488 = vmul.f32 %v484, %v480
        %v489 = vmul.f32 %v485, %v482
        %v490 = vadd.f32 %v471, %v486
        %v491 = vadd.f32 %v472, %v487
        %v492 = vadd.f32 %v473, %v488
        %v493 = vadd.f32 %v474, %v489
        %494 = vrot.lane.b32.xlu0 %v423, 126
        %v495 = vpop.permute.xlu0 %494
        %496 = vrot.lane.b32.xlu0 %v424, 126
        %v497 = vpop.permute.xlu0 %496
        %498 = vrot.lane.b32.xlu0 %v425, 126
        %v499 = vpop.permute.xlu0 %498
        %500 = vrot.lane.b32.xlu0 %v426, 126
        %v501 = vpop.permute.xlu0 %500
        %s502 = scalar_lea.vmem %s1, 64
        %v503 = vld [vmem:[%s502] sm:$0xff]
        %v504 = vld [vmem:[%s502 + $0x8] sm:$0xff]
        %v505 = vmul.f32 %v503, %v495
        %v506 = vmul.f32 %v504, %v497
        %v507 = vmul.f32 %v503, %v499
        %v508 = vmul.f32 %v504, %v501
        %v509 = vadd.f32 %v490, %v505
        %v510 = vadd.f32 %v491, %v506
        %v511 = vadd.f32 %v492, %v507
        %v512 = vadd.f32 %v493, %v508
        %v513 = vld [vmem:[%s2] sm:$0xff]
        %v514 = vld [vmem:[%s2 + $0x8] sm:$0xff]
        %516 = vset.pattern.permute.xlu0 0
        %517 = vperm.xlu0 %516, %v513
        %v518 = vpop.permute.xlu0 %517
        %521 = vset.pattern.permute.xlu0 0
        %522 = vperm.xlu0 %521, %v514
        %v523 = vpop.permute.xlu0 %522
        %v525 = vadd.f32 %v509, %v518
        %v526 = vadd.f32 %v510, %v523
        %v527 = vadd.f32 %v511, %v518
        %v528 = vadd.f32 %v512, %v523
        %v529 = vld [vmem:[%s3] sm:$0xff]
        %v530 = vld [vmem:[%s3 + $0x8] sm:$0xff]
        %v531 = vld [vmem:[%s3 + $0x10] sm:$0xff]
        %v532 = vld [vmem:[%s3 + $0x18] sm:$0xff]
        %vm533 = vcmask 130048
        %v535 = vsel %vm533, %v529, 0
        %v538 = vsel %vm533, %v530, 0
        %v541 = vsel %vm533, %v531, 0
        %v544 = vsel %vm533, %v532, 0
        %546 = vmatprep.subr.mxu0 0.0
        %547 = vmatpush1.msra.mxu0 %v525
        %548 = vmatprep.subr.mxu0 0.0
        %549 = vmatpush1.msra.mxu0 %v526
        %550 = vmatprep.subr.mxu0 0.0
        %551 = vmatpush1.msra.mxu0 0.0
        %552 = vmatprep.subr.mxu0 0.0
        %553 = vmatpush1.msra.mxu0 0.0
        %554 = vmatprep.subr.mxu0 0.0
        %555 = vmatpush1.msra.mxu0 0.0
        %556 = vmatprep.subr.mxu0 0.0
        %557 = vmatpush1.msra.mxu0 0.0
        %558 = vmatprep.subr.mxu0 0.0
        %559 = vmatpush1.msra.mxu0 0.0
        %560 = vmatprep.subr.mxu0 0.0
        %561 = vmatpush1.msra.mxu0 0.0
        %562 = vmatprep.subr.mxu0 0.0
        %563 = vmatpush1.msra.mxu0 0.0
        %564 = vmatprep.subr.mxu0 0.0
        %565 = vmatpush1.msra.mxu0 0.0
        %566 = vmatprep.subr.mxu0 0.0
        %567 = vmatpush1.msra.mxu0 0.0
        %568 = vmatprep.subr.mxu0 0.0
        %569 = vmatpush1.msra.mxu0 0.0
        %570 = vmatprep.subr.mxu0 0.0
        %571 = vmatpush1.msra.mxu0 0.0
        %572 = vmatprep.subr.mxu0 0.0
        %573 = vmatpush1.msra.mxu0 0.0
        %574 = vmatprep.subr.mxu0 0.0
        %575 = vmatpush1.msra.mxu0 0.0
        %576 = vmatprep.subr.mxu0 0.0
        %577 = vmatpush1.msra.mxu0 0.0
        %578 = vmatprep.subr.mxu0 0.0
        %579 = vmatpush1.msra.mxu0 0.0
        %580 = vmatprep.subr.mxu0 0.0
        %581 = vmatpush1.msra.mxu0 0.0
        %582 = vmatprep.subr.mxu0 0.0
        %583 = vmatpush1.msra.mxu0 0.0
        %584 = vmatprep.subr.mxu0 0.0
        %585 = vmatpush1.msra.mxu0 0.0
        %586 = vmatprep.subr.mxu0 0.0
        %587 = vmatpush1.msra.mxu0 0.0
        %588 = vmatprep.subr.mxu0 0.0
        %589 = vmatpush1.msra.mxu0 0.0
        %590 = vmatprep.subr.mxu0 0.0
        %591 = vmatpush1.msra.mxu0 0.0
        %592 = vmatprep.subr.mxu0 0.0
        %593 = vmatpush1.msra.mxu0 0.0
        %594 = vmatprep.subr.mxu0 0.0
        %595 = vmatpush1.msra.mxu0 0.0
        %596 = vmatprep.subr.mxu0 0.0
        %597 = vmatpush1.msra.mxu0 0.0
        %598 = vmatprep.subr.mxu0 0.0
        %599 = vmatpush1.msra.mxu0 0.0
        %600 = vmatprep.subr.mxu0 0.0
        %601 = vmatpush1.msra.mxu0 0.0
        %602 = vmatprep.subr.mxu0 0.0
        %603 = vmatpush1.msra.mxu0 0.0
        %604 = vmatprep.subr.mxu0 0.0
        %605 = vmatpush1.msra.mxu0 0.0
        %606 = vmatprep.subr.mxu0 0.0
        %607 = vmatpush1.msra.mxu0 0.0
        %608 = vmatprep.subr.mxu0 0.0
        %609 = vmatpush1.msra.mxu0 0.0
        %610 = vmatprep.mubr.f32.mxu0 0.0
        %611 = vmatmul.mubr.f32.gmra.mrb[0].mxu0 %v535
        %v612 = vpop.f32.mrb[0].mxu0
        %v613 = vadd.f32 0.0, %v612
        %v614 = vpop.f32.mrb[0].mxu0
        %615 = vmatprep.mubr.f32.mxu0 0.0
        %616 = vmatmul.mubr.f32.gmra.mrb[0].mxu0 %v538
        %v617 = vpop.f32.mrb[0].mxu0
        %v618 = vadd.f32 0.0, %v617
        %v619 = vpop.f32.mrb[0].mxu0
        %620 = vmatprep.mubr.f32.mxu0 0.0
        %621 = vmatmul.mubr.f32.gmra.mrb[0].mxu0 %v541
        %v622 = vpop.f32.mrb[0].mxu0
        %v623 = vadd.f32 0.0, %v622
        %v624 = vpop.f32.mrb[0].mxu0
        %625 = vmatprep.mubr.f32.mxu0 0.0
        %626 = vmatmul.mubr.f32.gmra.mrb[0].mxu0 %v544
        %v627 = vpop.f32.mrb[0].mxu0
        %v628 = vadd.f32 0.0, %v627
        %v629 = vpop.f32.mrb[0].mxu0
        %630 = vdwg.mxu0
        %631 = vmatprep.subr.mxu0 0.0
        %632 = vmatpush1.msra.mxu0 %v527
        %633 = vmatprep.subr.mxu0 0.0
        %634 = vmatpush1.msra.mxu0 %v528
        %635 = vmatprep.subr.mxu0 0.0
        %636 = vmatpush1.msra.mxu0 0.0
        %637 = vmatprep.subr.mxu0 0.0
        %638 = vmatpush1.msra.mxu0 0.0
        %639 = vmatprep.subr.mxu0 0.0
        %640 = vmatpush1.msra.mxu0 0.0
        %641 = vmatprep.subr.mxu0 0.0
        %642 = vmatpush1.msra.mxu0 0.0
        %643 = vmatprep.subr.mxu0 0.0
        %644 = vmatpush1.msra.mxu0 0.0
        %645 = vmatprep.subr.mxu0 0.0
        %646 = vmatpush1.msra.mxu0 0.0
        %647 = vmatprep.subr.mxu0 0.0
        %648 = vmatpush1.msra.mxu0 0.0
        %649 = vmatprep.subr.mxu0 0.0
        %650 = vmatpush1.msra.mxu0 0.0
        %651 = vmatprep.subr.mxu0 0.0
        %652 = vmatpush1.msra.mxu0 0.0
        %653 = vmatprep.subr.mxu0 0.0
        %654 = vmatpush1.msra.mxu0 0.0
        %655 = vmatprep.subr.mxu0 0.0
        %656 = vmatpush1.msra.mxu0 0.0
        %657 = vmatprep.subr.mxu0 0.0
        %658 = vmatpush1.msra.mxu0 0.0
        %659 = vmatprep.subr.mxu0 0.0
        %660 = vmatpush1.msra.mxu0 0.0
        %661 = vmatprep.subr.mxu0 0.0
        %662 = vmatpush1.msra.mxu0 0.0
        %663 = vmatprep.subr.mxu0 0.0
        %664 = vmatpush1.msra.mxu0 0.0
        %665 = vmatprep.subr.mxu0 0.0
        %666 = vmatpush1.msra.mxu0 0.0
        %667 = vmatprep.subr.mxu0 0.0
        %668 = vmatpush1.msra.mxu0 0.0
        %669 = vmatprep.subr.mxu0 0.0
        %670 = vmatpush1.msra.mxu0 0.0
        %671 = vmatprep.subr.mxu0 0.0
        %672 = vmatpush1.msra.mxu0 0.0
        %673 = vmatprep.subr.mxu0 0.0
        %674 = vmatpush1.msra.mxu0 0.0
        %675 = vmatprep.subr.mxu0 0.0
        %676 = vmatpush1.msra.mxu0 0.0
        %677 = vmatprep.subr.mxu0 0.0
        %678 = vmatpush1.msra.mxu0 0.0
        %679 = vmatprep.subr.mxu0 0.0
        %680 = vmatpush1.msra.mxu0 0.0
        %681 = vmatprep.subr.mxu0 0.0
        %682 = vmatpush1.msra.mxu0 0.0
        %683 = vmatprep.subr.mxu0 0.0
        %684 = vmatpush1.msra.mxu0 0.0
        %685 = vmatprep.subr.mxu0 0.0
        %686 = vmatpush1.msra.mxu0 0.0
        %687 = vmatprep.subr.mxu0 0.0
        %688 = vmatpush1.msra.mxu0 0.0
        %689 = vmatprep.subr.mxu0 0.0
        %690 = vmatpush1.msra.mxu0 0.0
        %691 = vmatprep.subr.mxu0 0.0
        %692 = vmatpush1.msra.mxu0 0.0
        %693 = vmatprep.subr.mxu0 0.0
        %694 = vmatpush1.msra.mxu0 0.0
        %695 = vmatprep.mubr.f32.mxu0 0.0
        %696 = vmatmul.mubr.f32.gmra.mrb[0].mxu0 %v535
        %v697 = vpop.f32.mrb[0].mxu0
        %v698 = vadd.f32 0.0, %v697
        %v699 = vpop.f32.mrb[0].mxu0
        %700 = vmatprep.mubr.f32.mxu0 0.0
        %701 = vmatmul.mubr.f32.gmra.mrb[0].mxu0 %v538
        %v702 = vpop.f32.mrb[0].mxu0
        %v703 = vadd.f32 0.0, %v702
        %v704 = vpop.f32.mrb[0].mxu0
        %705 = vmatprep.mubr.f32.mxu0 0.0
        %706 = vmatmul.mubr.f32.gmra.mrb[0].mxu0 %v541
        %v707 = vpop.f32.mrb[0].mxu0
        %v708 = vadd.f32 0.0, %v707
        %v709 = vpop.f32.mrb[0].mxu0
        %710 = vmatprep.mubr.f32.mxu0 0.0
        %711 = vmatmul.mubr.f32.gmra.mrb[0].mxu0 %v544
        %v712 = vpop.f32.mrb[0].mxu0
        %v713 = vadd.f32 0.0, %v712
        %v714 = vpop.f32.mrb[0].mxu0
        %715 = vdwg.mxu0
        %v716 = vld [vmem:[%s4] sm:$0xff]
        %v717 = vld [vmem:[%s4 + $0x8] sm:$0xff]
        %v718 = vld [vmem:[%s4 + $0x10] sm:$0xff]
        %v719 = vld [vmem:[%s4 + $0x18] sm:$0xff]
        %721 = vset.pattern.permute.xlu0 0
        %722 = vperm.xlu0 %721, %v716
        %v723 = vpop.permute.xlu0 %722
        %726 = vset.pattern.permute.xlu0 0
        %727 = vperm.xlu0 %726, %v717
        %v728 = vpop.permute.xlu0 %727
        %731 = vset.pattern.permute.xlu0 0
        %732 = vperm.xlu0 %731, %v718
        %v733 = vpop.permute.xlu0 %732
        %736 = vset.pattern.permute.xlu0 0
        %737 = vperm.xlu0 %736, %v719
        %v738 = vpop.permute.xlu0 %737
        %v740 = vadd.f32 %v613, %v723
        %v741 = vadd.f32 %v618, %v728
        %v742 = vadd.f32 %v623, %v733
        %v743 = vadd.f32 %v628, %v738
        %v744 = vadd.f32 %v698, %v723
        %v745 = vadd.f32 %v703, %v728
        %v746 = vadd.f32 %v708, %v733
        %v747 = vadd.f32 %v713, %v738
        %748 = vadd.xlane.f32.xlu0 %v740
        %v749 = vpop.xlane.xlu0 %748
        %750 = vadd.xlane.f32.xlu0 %v741
        %v751 = vpop.xlane.xlu0 %750
        %752 = vadd.xlane.f32.xlu0 %v742
        %v753 = vpop.xlane.xlu0 %752
        %754 = vadd.xlane.f32.xlu0 %v743
        %v755 = vpop.xlane.xlu0 %754
        %756 = vadd.xlane.f32.xlu0 %v744
        %v757 = vpop.xlane.xlu0 %756
        %758 = vadd.xlane.f32.xlu0 %v745
        %v759 = vpop.xlane.xlu0 %758
        %760 = vadd.xlane.f32.xlu0 %v746
        %v761 = vpop.xlane.xlu0 %760
        %762 = vadd.xlane.f32.xlu0 %v747
        %v763 = vpop.xlane.xlu0 %762
        %v764 = vmul.f32 %v749, 0.0078125
        %v765 = vmul.f32 %v751, 0.0078125
        %v766 = vmul.f32 %v753, 0.0078125
        %v767 = vmul.f32 %v755, 0.0078125
        %v768 = vmul.f32 %v757, 0.0078125
        %v769 = vmul.f32 %v759, 0.0078125
        %v770 = vmul.f32 %v761, 0.0078125
        %v771 = vmul.f32 %v763, 0.0078125
        %v772 = vld [vmem:[%s8] sm:$0x1]
        %v774 = vlaneseq
        %v775 = vshrl.u32 %v774, 7
        %v776 = vsub.s32 0, %v775
        %v777 = vrot.slane %v772, %v776
        %v779 = vadd.f32 %v777, 0.0
        %v780 = vld [vmem:[%s5] sm:$0x1]
        %v781 = vld [vmem:[%s7] sm:$0x1]
        %v782 = vlaneseq
        %v783 = vshrl.u32 %v782, 7
        %v784 = vsub.s32 0, %v783
        %v785 = vrot.slane %v780, %v784
        %788 = vbcast.lane.b32.xlu0 %v785, 256
        %v789 = vpop.permute.xlu0 %788
        %s791 = sor.u32 256, 8
        %792 = vbcast.lane.b32.xlu0 %v785, %s791
        %v793 = vpop.permute.xlu0 %792
        %s795 = sor.u32 256, 16
        %796 = vbcast.lane.b32.xlu0 %v785, %s795
        %v797 = vpop.permute.xlu0 %796
        %s799 = sor.u32 256, 24
        %800 = vbcast.lane.b32.xlu0 %v785, %s799
        %v801 = vpop.permute.xlu0 %800
        %v806 = vmul.f32 %v764, %v789
        %v807 = vmul.f32 %v765, %v793
        %v808 = vmul.f32 %v766, %v797
        %v809 = vmul.f32 %v767, %v801
        %v810 = vmul.f32 %v768, %v789
        %v811 = vmul.f32 %v769, %v793
        %v812 = vmul.f32 %v770, %v797
        %v813 = vmul.f32 %v771, %v801
        %822 = vset.pattern.permute.xlu0 0
        %823 = vperm.xlu0 %822, %v806
        %v824 = vpop.permute.xlu0 %823
        %825 = vset.pattern.permute.xlu0 0
        %826 = vperm.xlu0 %825, %v807
        %v827 = vpop.permute.xlu0 %826
        %828 = vset.pattern.permute.xlu0 0
        %829 = vperm.xlu0 %828, %v808
        %v830 = vpop.permute.xlu0 %829
        %831 = vset.pattern.permute.xlu0 0
        %832 = vperm.xlu0 %831, %v809
        %v833 = vpop.permute.xlu0 %832
        %834 = vset.pattern.permute.xlu0 0
        %835 = vperm.xlu0 %834, %v810
        %v836 = vpop.permute.xlu0 %835
        %837 = vset.pattern.permute.xlu0 0
        %838 = vperm.xlu0 %837, %v811
        %v839 = vpop.permute.xlu0 %838
        %840 = vset.pattern.permute.xlu0 0
        %841 = vperm.xlu0 %840, %v812
        %v842 = vpop.permute.xlu0 %841
        %843 = vset.pattern.permute.xlu0 0
        %844 = vperm.xlu0 %843, %v813
        %v845 = vpop.permute.xlu0 %844
        %v846 = vlaneseq
        %v847 = vand.u32 %v846, 127
        %v848 = vlaneseq
        %v849 = vshrl.u32 %v848, 7
        %v850 = vsub.s32 %v847, %v849
        %v851 = vrot.slane %v824, %v850
        %v852 = vadd.s32 %v847, 4294967288
        %v853 = vlaneseq
        %v854 = vshrl.u32 %v853, 7
        %v855 = vsub.s32 %v852, %v854
        %v856 = vrot.slane %v827, %v855
        %vm857 = vcmask 130112
        %v858 = vsel %vm857, %v856, %v851
        %v859 = vadd.s32 %v847, 4294967280
        %v860 = vlaneseq
        %v861 = vshrl.u32 %v860, 7
        %v862 = vsub.s32 %v859, %v861
        %v863 = vrot.slane %v830, %v862
        %vm864 = vcmask 195712
        %v865 = vsel %vm864, %v863, %v858
        %v866 = vadd.s32 %v847, 4294967272
        %v867 = vlaneseq
        %v868 = vshrl.u32 %v867, 7
        %v869 = vsub.s32 %v866, %v868
        %v870 = vrot.slane %v833, %v869
        %vm871 = vcmask 261312
        %v872 = vsel %vm871, %v870, %v865
        %v873 = vlaneseq
        %v874 = vshrl.u32 %v873, 7
        %v875 = vsub.s32 %v847, %v874
        %v876 = vrot.slane %v836, %v875
        %v877 = vlaneseq
        %v878 = vshrl.u32 %v877, 7
        %v879 = vsub.s32 %v852, %v878
        %v880 = vrot.slane %v839, %v879
        %v881 = vsel %vm857, %v880, %v876
        %v882 = vlaneseq
        %v883 = vshrl.u32 %v882, 7
        %v884 = vsub.s32 %v859, %v883
        %v885 = vrot.slane %v842, %v884
        %v886 = vsel %vm864, %v885, %v881
        %v887 = vlaneseq
        %v888 = vshrl.u32 %v887, 7
        %v889 = vsub.s32 %v866, %v888
        %v890 = vrot.slane %v845, %v889
        %v891 = vsel %vm871, %v890, %v886
        %vm892 = vcmask 1041409
        %v893 = vsel %vm892, %v891, %v872
        %vm895 = vcmask 254976
        %v896 = vsel %vm895, %v893, 0.0
        %897 = vadd.xlane.f32.xlu0 %v896
        %v898 = vpop.xlane.xlu0 %897
        %s899 = sld [smem:[#allocation7]]
        %v900 = vstv %s899
        %v901 = vadd.f32 %v898, %v900
        %v902 = vmax.f32 %v901, 0.0
        %v903 = vlaneseq
        %v904 = vshrl.u32 %v903, 7
        %v905 = vsub.s32 0, %v904
        %v906 = vrot.slane %v781, %v905
        %v907 = vmul.f32 %v902, %v906
        %v908 = vadd.f32 %v779, %v907
        %v909 = vld [vmem:[%s5 + $0x1] sm:$0x1]
        %v910 = vld [vmem:[%s7 + $0x1] sm:$0x1]
        %v911 = vlaneseq
        %v912 = vshrl.u32 %v911, 7
        %v913 = vsub.s32 0, %v912
        %v914 = vrot.slane %v909, %v913
        %917 = vbcast.lane.b32.xlu0 %v914, 256
        %v918 = vpop.permute.xlu0 %917
        %s920 = sor.u32 256, 8
        %921 = vbcast.lane.b32.xlu0 %v914, %s920
        %v922 = vpop.permute.xlu0 %921
        %s924 = sor.u32 256, 16
        %925 = vbcast.lane.b32.xlu0 %v914, %s924
        %v926 = vpop.permute.xlu0 %925
        %s928 = sor.u32 256, 24
        %929 = vbcast.lane.b32.xlu0 %v914, %s928
        %v930 = vpop.permute.xlu0 %929
        %v935 = vmul.f32 %v764, %v918
        %v936 = vmul.f32 %v765, %v922
        %v937 = vmul.f32 %v766, %v926
        %v938 = vmul.f32 %v767, %v930
        %v939 = vmul.f32 %v768, %v918
        %v940 = vmul.f32 %v769, %v922
        %v941 = vmul.f32 %v770, %v926
        %v942 = vmul.f32 %v771, %v930
        %951 = vset.pattern.permute.xlu0 0
        %952 = vperm.xlu0 %951, %v935
        %v953 = vpop.permute.xlu0 %952
        %954 = vset.pattern.permute.xlu0 0
        %955 = vperm.xlu0 %954, %v936
        %v956 = vpop.permute.xlu0 %955
        %957 = vset.pattern.permute.xlu0 0
        %958 = vperm.xlu0 %957, %v937
        %v959 = vpop.permute.xlu0 %958
        %960 = vset.pattern.permute.xlu0 0
        %961 = vperm.xlu0 %960, %v938
        %v962 = vpop.permute.xlu0 %961
        %963 = vset.pattern.permute.xlu0 0
        %964 = vperm.xlu0 %963, %v939
        %v965 = vpop.permute.xlu0 %964
        %966 = vset.pattern.permute.xlu0 0
        %967 = vperm.xlu0 %966, %v940
        %v968 = vpop.permute.xlu0 %967
        %969 = vset.pattern.permute.xlu0 0
        %970 = vperm.xlu0 %969, %v941
        %v971 = vpop.permute.xlu0 %970
        %972 = vset.pattern.permute.xlu0 0
        %973 = vperm.xlu0 %972, %v942
        %v974 = vpop.permute.xlu0 %973
        %v975 = vlaneseq
        %v976 = vshrl.u32 %v975, 7
        %v977 = vsub.s32 %v847, %v976
        %v978 = vrot.slane %v953, %v977
        %v979 = vlaneseq
        %v980 = vshrl.u32 %v979, 7
        %v981 = vsub.s32 %v852, %v980
        %v982 = vrot.slane %v956, %v981
        %v983 = vsel %vm857, %v982, %v978
        %v984 = vlaneseq
        %v985 = vshrl.u32 %v984, 7
        %v986 = vsub.s32 %v859, %v985
        %v987 = vrot.slane %v959, %v986
        %v988 = vsel %vm864, %v987, %v983
        %v989 = vlaneseq
        %v990 = vshrl.u32 %v989, 7
        %v991 = vsub.s32 %v866, %v990
        %v992 = vrot.slane %v962, %v991
        %v993 = vsel %vm871, %v992, %v988
        %v994 = vlaneseq
        %v995 = vshrl.u32 %v994, 7
        %v996 = vsub.s32 %v847, %v995
        %v997 = vrot.slane %v965, %v996
        %v998 = vlaneseq
        %v999 = vshrl.u32 %v998, 7
        %v1000 = vsub.s32 %v852, %v999
        %v1001 = vrot.slane %v968, %v1000
        %v1002 = vsel %vm857, %v1001, %v997
        %v1003 = vlaneseq
        %v1004 = vshrl.u32 %v1003, 7
        %v1005 = vsub.s32 %v859, %v1004
        %v1006 = vrot.slane %v971, %v1005
        %v1007 = vsel %vm864, %v1006, %v1002
        %v1008 = vlaneseq
        %v1009 = vshrl.u32 %v1008, 7
        %v1010 = vsub.s32 %v866, %v1009
        %v1011 = vrot.slane %v974, %v1010
        %v1012 = vsel %vm871, %v1011, %v1007
        %v1013 = vsel %vm892, %v1012, %v993
        %v1015 = vsel %vm895, %v1013, 0.0
        %1016 = vadd.xlane.f32.xlu0 %v1015
        %v1017 = vpop.xlane.xlu0 %1016
        %s1018 = sld [smem:[#allocation7 + $0x1]]
        %v1019 = vstv %s1018
        %v1020 = vadd.f32 %v1017, %v1019
        %v1021 = vmax.f32 %v1020, 0.0
        %v1022 = vlaneseq
        %v1023 = vshrl.u32 %v1022, 7
        %v1024 = vsub.s32 0, %v1023
        %v1025 = vrot.slane %v910, %v1024
        %v1026 = vmul.f32 %v1021, %v1025
        %v1027 = vadd.f32 %v908, %v1026
        %v1028 = vxor.u32 %v1027, 2147483648
        %v1029 = vmul.f32 %v1028, 1.442695
        %v1030 = vpow.pop %v1029
        %v1031 = vadd.f32 %v1030, 1.0
        %v1032 = vrcp.pop %v1031
        %v1033 = vmul.f32 1.0, %v1032
        %v1034 = vlaneseq
        %v1035 = vshrl.u32 %v1034, 7
        %v1036 = vsub.s32 0, %v1035
        %v1037 = vrot.slane %v1033, %v1036
        %1039 = vbcast.lane.b32.xlu0 %v1037, 256
        %v1040 = vpop.permute.xlu0 %1039
        %s1042 = sor.u32 256, 8
        %1043 = vbcast.lane.b32.xlu0 %v1037, %s1042
        %v1044 = vpop.permute.xlu0 %1043
        %s1046 = sor.u32 256, 16
        %1047 = vbcast.lane.b32.xlu0 %v1037, %s1046
        %v1048 = vpop.permute.xlu0 %1047
        %s1050 = sor.u32 256, 24
        %1051 = vbcast.lane.b32.xlu0 %v1037, %s1050
        %v1052 = vpop.permute.xlu0 %1051
        %v1053 = vlaneseq
        %v1054 = vshrl.u32 %v1053, 7
        %v1055 = vsub.s32 1, %v1054
        %v1056 = vrot.slane %v1033, %v1055
        %1058 = vbcast.lane.b32.xlu0 %v1056, 256
        %v1059 = vpop.permute.xlu0 %1058
        %s1061 = sor.u32 256, 8
        %1062 = vbcast.lane.b32.xlu0 %v1056, %s1061
        %v1063 = vpop.permute.xlu0 %1062
        %s1065 = sor.u32 256, 16
        %1066 = vbcast.lane.b32.xlu0 %v1056, %s1065
        %v1067 = vpop.permute.xlu0 %1066
        %s1069 = sor.u32 256, 24
        %1070 = vbcast.lane.b32.xlu0 %v1056, %s1069
        %v1071 = vpop.permute.xlu0 %1070
        %v1072 = vmul.f32 %v740, %v1040
        %v1073 = vmul.f32 %v741, %v1044
        %v1074 = vmul.f32 %v742, %v1048
        %v1075 = vmul.f32 %v743, %v1052
        %v1076 = vmul.f32 %v744, %v1059
        %v1077 = vmul.f32 %v745, %v1063
        %v1078 = vmul.f32 %v746, %v1067
        %v1079 = vmul.f32 %v747, %v1071
        %v1080 = vmax.f32 %v1072, %v1074
        %v1081 = vmax.f32 %v1073, %v1075
        %v1082 = vmax.f32 %v1080, %v1081
        %v1083 = vrot.slane %v1082, 4
        %v1084 = vmax.f32 %v1082, %v1083
        %v1085 = vrot.slane %v1084, 2
        %v1086 = vmax.f32 %v1084, %v1085
        %v1087 = vrot.slane %v1086, 1
        %v1088 = vmax.f32 %v1086, %v1087
        %v1089 = vmax.f32 %v1076, %v1078
        %v1090 = vmax.f32 %v1077, %v1079
        %v1091 = vmax.f32 %v1089, %v1090
        %v1092 = vrot.slane %v1091, 4
        %v1093 = vmax.f32 %v1091, %v1092
        %v1094 = vrot.slane %v1093, 2
        %v1095 = vmax.f32 %v1093, %v1094
        %v1096 = vrot.slane %v1095, 1
        %v1097 = vmax.f32 %v1095, %v1096
        %v1098 = vadd.f32 %v1072, %v1073
        %v1099 = vadd.f32 %v1098, %v1074
        %v1100 = vadd.f32 %v1099, %v1075
        %v1101 = vrot.slane %v1100, 4
        %v1102 = vadd.f32 %v1100, %v1101
        %v1103 = vrot.slane %v1102, 2
        %v1104 = vadd.f32 %v1102, %v1103
        %v1105 = vrot.slane %v1104, 1
        %v1106 = vadd.f32 %v1104, %v1105
        %v1107 = vadd.f32 %v1076, %v1077
        %v1108 = vadd.f32 %v1107, %v1078
        %v1109 = vadd.f32 %v1108, %v1079
        %v1110 = vrot.slane %v1109, 4
        %v1111 = vadd.f32 %v1109, %v1110
        %v1112 = vrot.slane %v1111, 2
        %v1113 = vadd.f32 %v1111, %v1112
        %v1114 = vrot.slane %v1113, 1
        %v1115 = vadd.f32 %v1113, %v1114
        %v1116 = vrcp.pop 32.0
        %v1117 = vmul.f32 %v1106, %v1116
        %v1118 = vmul.f32 %v1115, %v1116
        %vm1119 = vcmask 1040384
        %v1120 = vsel %vm1119, %v1088, %v1117
        %v1121 = vsel %vm1119, %v1097, %v1118
        %1122 = vrot.lane.b32.xlu0 %v1120, 3
        %v1123 = vpop.permute.xlu0 %1122
        %1124 = vrot.lane.b32.xlu0 %v1121, 3
        %v1125 = vpop.permute.xlu0 %1124
        %v1126 = vld [vmem:[%s9] sm:$0x3]
        %v1127 = vmul.f32 %v1126, %v1123
        %v1128 = vmul.f32 %v1126, %v1125
        %v1129 = vadd.f32 %v1127, 0.0
        %v1130 = vadd.f32 %v1128, 0.0
        %1131 = vrot.lane.b32.xlu0 %v1120, 2
        %v1132 = vpop.permute.xlu0 %1131
        %1133 = vrot.lane.b32.xlu0 %v1121, 2
        %v1134 = vpop.permute.xlu0 %1133
        %s1135 = scalar_lea.vmem %s9, 2
        %v1136 = vld [vmem:[%s1135] sm:$0x3]
        %v1137 = vmul.f32 %v1136, %v1132
        %v1138 = vmul.f32 %v1136, %v1134
        %v1139 = vadd.f32 %v1129, %v1137
        %v1140 = vadd.f32 %v1130, %v1138
        %1141 = vrot.lane.b32.xlu0 %v1120, 1
        %v1142 = vpop.permute.xlu0 %1141
        %1143 = vrot.lane.b32.xlu0 %v1121, 1
        %v1144 = vpop.permute.xlu0 %1143
        %s1145 = scalar_lea.vmem %s9, 4
        %v1146 = vld [vmem:[%s1145] sm:$0x3]
        %v1147 = vmul.f32 %v1146, %v1142
        %v1148 = vmul.f32 %v1146, %v1144
        %v1149 = vadd.f32 %v1139, %v1147
        %v1150 = vadd.f32 %v1140, %v1148
        %s1151 = scalar_lea.vmem %s9, 6
        %v1152 = vld [vmem:[%s1151] sm:$0x3]
        %v1153 = vmul.f32 %v1152, %v1120
        %v1154 = vmul.f32 %v1152, %v1121
        %v1155 = vadd.f32 %v1149, %v1153
        %v1156 = vadd.f32 %v1150, %v1154
        %1157 = vrot.lane.b32.xlu0 %v1120, 127
        %v1158 = vpop.permute.xlu0 %1157
        %1159 = vrot.lane.b32.xlu0 %v1121, 127
        %v1160 = vpop.permute.xlu0 %1159
        %s1161 = scalar_lea.vmem %s9, 8
        %v1162 = vld [vmem:[%s1161] sm:$0x3]
        %v1163 = vmul.f32 %v1162, %v1158
        %v1164 = vmul.f32 %v1162, %v1160
        %v1165 = vadd.f32 %v1155, %v1163
        %v1166 = vadd.f32 %v1156, %v1164
        %1167 = vrot.lane.b32.xlu0 %v1120, 126
        %v1168 = vpop.permute.xlu0 %1167
        %1169 = vrot.lane.b32.xlu0 %v1121, 126
        %v1170 = vpop.permute.xlu0 %1169
        %s1171 = scalar_lea.vmem %s9, 10
        %v1172 = vld [vmem:[%s1171] sm:$0x3]
        %v1173 = vmul.f32 %v1172, %v1168
        %v1174 = vmul.f32 %v1172, %v1170
        %v1175 = vadd.f32 %v1165, %v1173
        %v1176 = vadd.f32 %v1166, %v1174
        %1177 = vrot.lane.b32.xlu0 %v1120, 125
        %v1178 = vpop.permute.xlu0 %1177
        %1179 = vrot.lane.b32.xlu0 %v1121, 125
        %v1180 = vpop.permute.xlu0 %1179
        %s1181 = scalar_lea.vmem %s9, 12
        %v1182 = vld [vmem:[%s1181] sm:$0x3]
        %v1183 = vmul.f32 %v1182, %v1178
        %v1184 = vmul.f32 %v1182, %v1180
        %v1185 = vadd.f32 %v1175, %v1183
        %v1186 = vadd.f32 %v1176, %v1184
        %vm1187 = vcmask 1041408
        %v1188 = vsel %vm1187, %v1185, 0.0
        %v1189 = vrot.slane %v1188, 4
        %v1190 = vadd.f32 %v1188, %v1189
        %v1191 = vrot.slane %v1190, 2
        %v1192 = vadd.f32 %v1190, %v1191
        %v1193 = vrot.slane %v1192, 1
        %v1194 = vadd.f32 %v1192, %v1193
        %v1195 = vsel %vm1187, %v1186, 0.0
        %v1196 = vrot.slane %v1195, 4
        %v1197 = vadd.f32 %v1195, %v1196
        %v1198 = vrot.slane %v1197, 2
        %v1199 = vadd.f32 %v1197, %v1198
        %v1200 = vrot.slane %v1199, 1
        %v1201 = vadd.f32 %v1199, %v1200
        %s1202 = sld [smem:[#allocation2]]
        %v1203 = vstv %s1202
        %v1204 = vadd.f32 %v1194, %v1203
        %v1205 = vadd.f32 %v1201, %v1203
        %v1206 = vxor.u32 %v1204, 2147483648
        %v1207 = vxor.u32 %v1205, 2147483648
        %v1208 = vmul.f32 %v1206, 1.442695
        %v1209 = vpow.pop %v1208
        %v1210 = vmul.f32 %v1207, 1.442695
        %v1211 = vpow.pop %v1210
        %v1212 = vadd.f32 %v1209, 1.0
        %v1213 = vadd.f32 %v1211, 1.0
        %v1214 = vrcp.pop %v1212
        %v1215 = vmul.f32 1.0, %v1214
        %v1216 = vrcp.pop %v1213
        %v1217 = vmul.f32 1.0, %v1216
        %v1218 = vmul.f32 %v1072, %v1215
        %v1219 = vmul.f32 %v1073, %v1215
        %v1220 = vmul.f32 %v1074, %v1215
        %v1221 = vmul.f32 %v1075, %v1215
        %v1222 = vmul.f32 %v1076, %v1217
        %v1223 = vmul.f32 %v1077, %v1217
        %v1224 = vmul.f32 %v1078, %v1217
        %v1225 = vmul.f32 %v1079, %v1217
        %1226 = vst [vmem:[%s420] sm:$0xff] %v1218
        %1227 = vst [vmem:[%s420 + $0x8] sm:$0xff] %v1219
        %1228 = vst [vmem:[%s420 + $0x10] sm:$0xff] %v1220
        %1229 = vst [vmem:[%s420 + $0x18] sm:$0xff] %v1221
        %1230 = vst [vmem:[%s420 + $0x20] sm:$0xff] %v1222
        %1231 = vst [vmem:[%s420 + $0x28] sm:$0xff] %v1223
        %1232 = vst [vmem:[%s420 + $0x30] sm:$0xff] %v1224
        %1233 = vst [vmem:[%s420 + $0x38] sm:$0xff] %v1225
        %s1234 = sand.u32 %s274, 1
        %s1235 = scalar_lea.sflag [#allocation5], %s1234
        %s1236 = sand.u32 %s274, 1
        %s1237 = smul.addr %s1236, 64
        %s1238 = scalar_lea.vmem [#allocation8], %s1237
        // Predicated region
        $region73: #{tpu_custom_call.1} parent=63 // pred_check
          %p1239 = pneg %p284
        $region74: #{tpu_custom_call.1} parent=63 // pred_check_branch
          %1241 = sbr.rel (%p1239) target = $region76
        $region75: #{tpu_custom_call.1} parent=63 // pred_region
          %s1242 = smul.u32 2, %s30
          %s1244 = ssub.s32 1024, 1024
          %1245 = vsyncadd %s1235, %s1244
          %s1246 = smul.addr %s1242, 4
          %s1247 = smul.addr %s1246, 128
          %s1248 = scalar_lea.hbm %s11, %s1247
          %s1249 = sshll.u32 %s1238, 4
          %s1250 = int_to_ptr.vmem [resolvable:$true] %s1249
          %1255 = dma.vmem_to_hbm [thread:$0]  %s1250, 1024, %s1248, %s1235, 128, 128, 8
        $region76: #{tpu_custom_call.1} parent=63 // pred_fallthru
          _
      $region64: #{tpu_custom_call.1} parent=5 // pred_fallthru
        _
      %p1256 = scmp.le.s32.totalorder 2, %s25
      // Predicated region
      $region77: #{tpu_custom_call.1} parent=5 // pred_check
        %p1257 = pneg %p1256
      $region78: #{tpu_custom_call.1} parent=5 // pred_check_branch
        %1259 = sbr.rel (%p1257) target = $region80
      $region79: #{tpu_custom_call.1} parent=5 // pred_region
        %s1260 = ssub.s32 %s25, 2
        // Predicated region
        $region81: #{tpu_custom_call.1} parent=79 // pred_check
          %p1261 = pneg %p290
        $region82: #{tpu_custom_call.1} parent=79 // pred_check_branch
          %1263 = sbr.rel (%p1261) target = $region84
        $region83: #{tpu_custom_call.1} parent=79 // pred_region
          %s1264 = sand.u32 %s275, 1
          %s1265 = scalar_lea.sflag [#allocation5], %s1264
          %s1266 = sand.u32 %s275, 1
          %s1267 = smul.addr %s1266, 64
          %s1268 = scalar_lea.vmem [#allocation8], %s1267
          %1269 = dma.done %s1265, 1024
        $region84: #{tpu_custom_call.1} parent=79 // pred_fallthru
          _
      $region80: #{tpu_custom_call.1} parent=5 // pred_fallthru
        _
    $region6: #{tpu_custom_call.1} parent=1 // loop_footer
      %s29 = sadd.s32 1, %s25
    $region7: #{tpu_custom_call.1} parent=1 // loop_footer_branch
      %24 = sbr.rel target = $region3
    $region8: #{tpu_custom_call.1} parent=1 // loop_exit
      _
    %1270 = vsyncpa [#allocation4], 1
    %s1271 = scalar_lea.sflag [#allocation4], 1
    %1272 = vsyncpa %s1271, 1
    %1273 = vsyncpa [#allocation5], 1
    %s1274 = scalar_lea.sflag [#allocation5], 1
    %1275 = vsyncpa %s1274, 1
    %1276 = vsyncpa [#allocation6], 1
    %s1277 = scalar_lea.sflag [#allocation6], 1
    %1278 = vsyncpa %s1277, 1

</llo_original>
